<compile_context>
chip_gen: v7x
topology: tpu7x:2x2x1
jax: 0.10.0
libtpu: 0.0.40
codegen_flags: <defaults>
</compile_context>

<pallas_src>
import math

import jax
import jax.numpy as jnp
from jax.experimental import pallas as pl
from jax.experimental.pallas import tpu as pltpu

# ---------------- configuration (the `params` object) ----------------
B = 4              # batch (also the MHA sequence axis, see layout note)
SPEECH_H = 8       # params.speech_h  (BatchNorm1d channels / MHA batch axis)
SPEECH_W = 16      # params.speech_w
EMBED = 32         # params.embed_dim == params.hidden_size
NUM_HEADS = 4      # params.num_heads
HEAD_DIM = EMBED // NUM_HEADS
N_CLASSES = 5      # params.n_classes
BN_EPS = 1e-5

BH = B * SPEECH_H          # 32 flattened (batch, speech_h) rows per group
LANE = 128                 # lane-dense blob / output width
NEG = -1e30                # finite additive mask (NaN-safe vs -inf)

# ---------------- packed parameter blob layout (row offsets) ----------------
R_WEMB = 0            # (SPEECH_W, EMBED)   embedding weight
R_WQS = 16            # (EMBED, 4*EMBED)    per-head-masked, 1/sqrt(hd)-scaled Wq
R_WKV = 48            # (EMBED, 2*EMBED)    [Wk | Wv]
R_WO = 80             # (EMBED, EMBED)      MHA out-proj
R_W1 = 112            # (EMBED, EMBED)      HAN fc1
R_WF1 = 144           # (EMBED, EMBED)      classifier fc1
R_WF2 = 176           # (EMBED, LANE)       classifier fc2, zero-padded cols
R_BNA = 208           # (BH, EMBED)         folded BN+residual scale
R_BNB = 240           # (BH, EMBED)         folded BN+residual shift
R_ATTB = 272          # (4*BH, BH)          additive channel mask (0 / -1e30)
R_GT = 400            # (B, BH)             HAN group-selection matrix
R_HMSK = 404          # (NUM_HEADS, EMBED)  head merge lane masks
R_B_EMB = 408         # (1, EMBED)
R_B_QS = 409          # (1, 4*EMBED)
R_B_KV = 410          # (1, 2*EMBED)
R_B_O = 411           # (1, EMBED)
R_B_1 = 412           # (1, EMBED)
R_W2ROW = 413         # (1, EMBED)          HAN fc2 weight as a row
R_B_2 = 414           # (1, 1)
R_B_F1 = 415          # (1, EMBED)
R_B_F2 = 416          # (1, LANE)           zero-padded
P_ROWS = 424          # total blob rows (multiple of 8)


# ---------------------------- fused Pallas kernel ----------------------------
def speech_model_kernel(x_ref, p_ref, out_ref):
    """One grid step == one independent batch of B utterances.

    x_ref:   (BH, SPEECH_W)  flattened (batch, speech_h) rows of this group
    p_ref:   (P_ROWS, LANE)  packed weights / biases / constant masks (resident)
    out_ref: (B, LANE)       lane-dense logits (first N_CLASSES cols valid)
    """
    f32 = jnp.float32

    # --- speech embedding: Linear(W->E) + ReLU ---
    w_emb = p_ref[R_WEMB:R_WEMB + SPEECH_W, 0:EMBED]
    b_emb = p_ref[R_B_EMB:R_B_EMB + 1, 0:EMBED]
    emb = jnp.maximum(
        jnp.dot(x_ref[...], w_emb, preferred_element_type=f32) + b_emb, 0.0)   # (BH, E)

    # --- eval BatchNorm1d(speech_h) + dropout(identity) + residual, folded
    #     at init into one per-row affine: enc = emb*(1+s) + t ---
    enc = (emb * p_ref[R_BNA:R_BNA + BH, 0:EMBED]
           + p_ref[R_BNB:R_BNB + BH, 0:EMBED])                                  # (BH, E)

    # --- Q projection: per-head lane mask + 1/sqrt(head_dim) folded into the
    #     weight at init -> one lane-dense (32,128) MXU matmul ---
    q_wide = (jnp.dot(enc, p_ref[R_WQS:R_WQS + EMBED, 0:NUM_HEADS * EMBED],
                      preferred_element_type=f32)
              + p_ref[R_B_QS:R_B_QS + 1, 0:NUM_HEADS * EMBED])                  # (BH, 4E)
    # --- fused K/V projection ---
    kv = (jnp.dot(enc, p_ref[R_WKV:R_WKV + EMBED, 0:2 * EMBED],
                  preferred_element_type=f32)
          + p_ref[R_B_KV:R_B_KV + 1, 0:2 * EMBED])                              # (BH, 2E)
    k2 = kv[:, 0:EMBED]
    v2 = kv[:, EMBED:2 * EMBED]

    # --- multi-head attention.  Seq axis = batch (batch_first=False quirk),
    #     MHA batch axis = speech_h.  Heads stacked along sublanes so the core
    #     is two (128,32)x(32,32) MXU matmuls. ---
    q_stack = jnp.concatenate(
        [q_wide[:, h * EMBED:(h + 1) * EMBED] for h in range(NUM_HEADS)], axis=0)  # (4*BH, E)
    s = jax.lax.dot_general(q_stack, k2, (((1,), (1,)), ((), ())),
                            preferred_element_type=f32)                        # (4*BH, BH)
    # precomputed additive bias: 0 where query/key share the speech_h channel, -1e30 otherwise
    s = s + p_ref[R_ATTB:R_ATTB + NUM_HEADS * BH, 0:BH]
    e_s = jnp.exp(s - jnp.max(s, axis=-1, keepdims=True))
    p_attn = e_s * pl.reciprocal(jnp.sum(e_s, axis=-1, keepdims=True), approx=False)
    o_stack = jnp.dot(p_attn, v2, preferred_element_type=f32)                  # (4*BH, E)

    # merge heads with precomputed lane masks (head h's lane group from sublane block h)
    hmask = p_ref[R_HMSK:R_HMSK + NUM_HEADS, 0:EMBED]                           # (4, E)
    attn = hmask[0:1, :] * o_stack[0:BH, :]
    for h in range(1, NUM_HEADS):
        attn = attn + hmask[h:h + 1, :] * o_stack[h * BH:(h + 1) * BH, :]       # (BH, E)

    # --- MHA output projection ---
    proj = (jnp.dot(attn, p_ref[R_WO:R_WO + EMBED, 0:EMBED],
                    preferred_element_type=f32)
            + p_ref[R_B_O:R_B_O + 1, 0:EMBED])                                  # (BH, E)

    # --- HanAttention: fc -> softmax over speech_h -> weighted sum, expressed
    #     as a row-group-reduction matmul with a precomputed selector ---
    t1 = jnp.maximum(
        jnp.dot(proj, p_ref[R_W1:R_W1 + EMBED, 0:EMBED], preferred_element_type=f32)
        + p_ref[R_B_1:R_B_1 + 1, 0:EMBED], 0.0)                                 # (BH, E)
    t = (jnp.sum(t1 * p_ref[R_W2ROW:R_W2ROW + 1, 0:EMBED], axis=-1, keepdims=True)
         + p_ref[R_B_2:R_B_2 + 1, 0:1])                                         # (BH, 1)
    e = jnp.exp(t - jnp.max(t, keepdims=True))       # per-group softmax is shift-invariant
    gt = p_ref[R_GT:R_GT + B, 0:BH]                                             # (B, BH)
    num = jnp.dot(gt, proj * e, preferred_element_type=f32)                     # (B, E)
    den = jnp.dot(gt, e, preferred_element_type=f32)                            # (B, 1)
    ctx = num * pl.reciprocal(den, approx=False)                                # (B, E)

    # --- classifier head: Linear -> ReLU -> (dropout == identity) -> Linear
    #     (lane-dense padded output) ---
    h1 = jnp.maximum(
        jnp.dot(ctx, p_ref[R_WF1:R_WF1 + EMBED, 0:EMBED], preferred_element_type=f32)
        + p_ref[R_B_F1:R_B_F1 + 1, 0:EMBED], 0.0)                               # (B, E)
    out_ref[...] = (jnp.dot(h1, p_ref[R_WF2:R_WF2 + EMBED, 0:LANE],
                            preferred_element_type=f32)
                    + p_ref[R_B_F2:R_B_F2 + 1, 0:LANE])                         # (B, LANE)


# ---------------------------- wrappers ----------------------------
def _run_pallas(x_groups, blob):
    """x_groups: (G, BH, SPEECH_W) -> logits (G, B, N_CLASSES)."""
    G = x_groups.shape[0]
    out = pl.pallas_call(
        speech_model_kernel,
        out_shape=jax.ShapeDtypeStruct((G, B, LANE), jnp.float32),
        grid=(G,),
        in_specs=[
            # one group of activations per grid step
            pl.BlockSpec((None, BH, SPEECH_W), lambda g: (g, 0, 0)),
            # parameter blob: constant block index -> single DMA, VMEM-resident
            pl.BlockSpec((P_ROWS, LANE), lambda g: (0, 0)),
        ],
        out_specs=pl.BlockSpec((None, B, LANE), lambda g: (g, 0, 0)),
        compiler_params=pltpu.CompilerParams(
            dimension_semantics=("parallel",)),
        cost_estimate=pl.CostEstimate(
            flops=1_200_000 * G,
            transcendentals=4_300 * G,
            bytes_accessed=P_ROWS * LANE * 4 + G * (BH * SPEECH_W + B * LANE) * 4),
    )(x_groups, blob)
    return out[:, :, :N_CLASSES]


def forward_batched(speechs, sentences, p):
    """speechs: (G, B, SPEECH_H, SPEECH_W) -- G independent batches per call."""
    del sentences  # unused by the PyTorch forward as well
    G = speechs.shape[0]
    x = speechs.reshape(G, BH, SPEECH_W)
    return _run_pallas(x, p["blob"])


def forward(speechs, sentences, p):
    """speechs: (B, SPEECH_H, SPEECH_W) -- exactly the PyTorch module's forward."""
    del sentences
    x = speechs.reshape(1, BH, SPEECH_W)
    return _run_pallas(x, p["blob"])[0]


# ---------------------------- parameters ----------------------------
def init_params(key):
    ks = jax.random.split(key, 12)

    def lin(k, fan_in, fan_out):
        kw, kb = jax.random.split(k)
        bound = 1.0 / math.sqrt(fan_in)
        w = jax.random.uniform(kw, (fan_in, fan_out), jnp.float32, -bound, bound)
        b = jax.random.uniform(kb, (1, fan_out), jnp.float32, -bound, bound)
        return w, b

    p = {}
    p["w_emb"], p["b_emb"] = lin(ks[0], SPEECH_W, EMBED)

    # BatchNorm1d(speech_h) eval-mode params.
    gamma = jnp.ones((SPEECH_H,), jnp.float32)
    beta = jnp.zeros((SPEECH_H,), jnp.float32)
    run_mean = 0.1 * jax.random.normal(ks[1], (SPEECH_H,), jnp.float32)
    run_var = 1.0 + 0.1 * jax.random.uniform(ks[2], (SPEECH_H,), jnp.float32)
    scale = gamma / jnp.sqrt(run_var + BN_EPS)
    shift = beta - run_mean * scale
    # Raw per-channel scale/shift (for the reference).
    p["bn_scale"] = jnp.tile(scale[:, None], (1, EMBED))
    p["bn_shift"] = jnp.tile(shift[:, None], (1, EMBED))
    # Folded eval-BN + residual affine (emb + bn == emb*(1+scale) + shift), tiled over batch.
    bn_a = jnp.tile((1.0 + scale)[:, None], (B, EMBED))
    bn_b = jnp.tile(shift[:, None], (B, EMBED))

    # MultiheadAttention in/out projections (raw, for the reference).
    p["wq"], p["bq"] = lin(ks[3], EMBED, EMBED)
    p["wk"], p["bk"] = lin(ks[4], EMBED, EMBED)
    p["wv"], p["bv"] = lin(ks[5], EMBED, EMBED)
    p["wo"], p["bo"] = lin(ks[6], EMBED, EMBED)

    # HanAttention: Linear(h, h) -> ReLU -> Linear(h, 1) -> softmax(dim=1).
    p["w1"], p["b1"] = lin(ks[7], EMBED, EMBED)
    p["w2"], p["b2"] = lin(ks[8], EMBED, 1)

    # fc head: Linear(h, h) -> ReLU -> dropout -> Linear(h, n_classes).
    p["wf1"], p["bf1"] = lin(ks[9], EMBED, EMBED)
    p["wf2"], p["bf2"] = lin(ks[10], EMBED, N_CLASSES)

    # ---------- packed, lane-padded parameter/constant blob (one DMA) ----------
    inv = 1.0 / math.sqrt(HEAD_DIM)
    col_head = (jnp.arange(EMBED) // HEAD_DIM)[None, :]                     # (1, E)
    wq_stack = jnp.concatenate(
        [jnp.where(col_head == h, p["wq"] * inv, 0.0) for h in range(NUM_HEADS)], axis=1)
    bq_stack = jnp.concatenate(
        [jnp.where(col_head == h, p["bq"] * inv, 0.0) for h in range(NUM_HEADS)], axis=1)
    wkv = jnp.concatenate([p["wk"], p["wv"]], axis=1)
    bkv = jnp.concatenate([p["bk"], p["bv"]], axis=1)

    # additive channel mask: a query row b*H+h only attends to key rows b'*H+h
    rc = jnp.arange(NUM_HEADS * BH)[:, None] % SPEECH_H
    cc = jnp.arange(BH)[None, :] % SPEECH_H
    attn_bias = jnp.where(rc == cc, 0.0, NEG).astype(jnp.float32)           # (4*BH, BH)

    gt = (jnp.arange(BH)[None, :] // SPEECH_H
          == jnp.arange(B)[:, None]).astype(jnp.float32)                    # (B, BH)
    hmask = (jnp.arange(EMBED)[None, :] // HEAD_DIM
             == jnp.arange(NUM_HEADS)[:, None]).astype(jnp.float32)         # (nh, E)

    wf2_pad = jnp.zeros((EMBED, LANE), jnp.float32).at[:, :N_CLASSES].set(p["wf2"])
    bf2_pad = jnp.zeros((1, LANE), jnp.float32).at[:, :N_CLASSES].set(p["bf2"])

    blob = jnp.zeros((P_ROWS, LANE), jnp.float32)

    def put(b, row, arr):
        arr = jnp.asarray(arr, jnp.float32)
        return b.at[row:row + arr.shape[0], 0:arr.shape[1]].set(arr)

    blob = put(blob, R_WEMB, p["w_emb"])
    blob = put(blob, R_WQS, wq_stack)
    blob = put(blob, R_WKV, wkv)
    blob = put(blob, R_WO, p["wo"])
    blob = put(blob, R_W1, p["w1"])
    blob = put(blob, R_WF1, p["wf1"])
    blob = put(blob, R_WF2, wf2_pad)
    blob = put(blob, R_BNA, bn_a)
    blob = put(blob, R_BNB, bn_b)
    blob = put(blob, R_ATTB, attn_bias)
    blob = put(blob, R_GT, gt)
    blob = put(blob, R_HMSK, hmask)
    blob = put(blob, R_B_EMB, p["b_emb"])
    blob = put(blob, R_B_QS, bq_stack)
    blob = put(blob, R_B_KV, bkv)
    blob = put(blob, R_B_O, p["bo"])
    blob = put(blob, R_B_1, p["b1"])
    blob = put(blob, R_W2ROW, p["w2"].T)
    blob = put(blob, R_B_2, p["b2"])
    blob = put(blob, R_B_F1, p["bf1"])
    blob = put(blob, R_B_F2, bf2_pad)
    p["blob"] = blob
    return p


# ---------------------------- pure-JAX reference ----------------------------
def _split_heads(x2):
    """(B*H, E) -> (H*nh, B, hd) exactly as torch's view/transpose in MHA."""
    x = x2.reshape(B, SPEECH_H, NUM_HEADS, HEAD_DIM)
    x = jnp.transpose(x, (1, 2, 0, 3))                 # (H, nh, B, hd)
    return x.reshape(SPEECH_H * NUM_HEADS, B, HEAD_DIM)


def _merge_heads(z):
    """(H*nh, B, hd) -> (B, H, E), inverse of _split_heads."""
    x = z.reshape(SPEECH_H, NUM_HEADS, B, HEAD_DIM)
    x = jnp.transpose(x, (2, 0, 1, 3))
    return x.reshape(B, SPEECH_H, EMBED)


def forward_ref(speechs, p):
    """Un-folded reference for a single (B, H, W) batch using the raw params."""
    emb = jnp.maximum(jnp.einsum('bhw,we->bhe', speechs, p["w_emb"]) + p["b_emb"][0], 0.0)
    bn = emb * p["bn_scale"][None] + p["bn_shift"][None]
    enc = emb + bn
    enc2 = enc.reshape(B * SPEECH_H, EMBED)
    q = _split_heads(enc2 @ p["wq"] + p["bq"][0])
    k = _split_heads(enc2 @ p["wk"] + p["bk"][0])
    v = _split_heads(enc2 @ p["wv"] + p["bv"][0])
    s = jnp.einsum('zqd,zkd->zqk', q / math.sqrt(HEAD_DIM), k)
    a = jax.nn.softmax(s, axis=-1)
    o = _merge_heads(jnp.einsum('zqk,zkd->zqd', a, v))
    o2 = o.reshape(B * SPEECH_H, EMBED) @ p["wo"] + p["bo"][0]
    x3 = o2.reshape(B, SPEECH_H, EMBED)
    t = jnp.maximum(o2 @ p["w1"] + p["b1"][0], 0.0) @ p["w2"] + p["b2"][0]
    alpha = jax.nn.softmax(t.reshape(B, SPEECH_H), axis=-1)
    ctx = jnp.sum(x3 * alpha[:, :, None], axis=1)
    h1 = jnp.maximum(ctx @ p["wf1"] + p["bf1"][0], 0.0)
    return h1 @ p["wf2"] + p["bf2"][0]


if __name__ == "__main__":
    key = jax.random.PRNGKey(0)
    kx, ksent, kp = jax.random.split(key, 3)
    G = 8  # independent batches processed by one pallas_call (parallel grid)
    speechs = jax.random.normal(kx, (G, B, SPEECH_H, SPEECH_W), jnp.float32)
    sentences = jax.random.normal(ksent, (G, B, 10), jnp.float32)  # unused, like the PyTorch forward
    params = init_params(kp)

    # Batched (grid) entry point.
    out = jax.jit(forward_batched)(speechs, sentences, params)
    out = jax.block_until_ready(out)
    assert out.shape == (G, B, N_CLASSES), out.shape
    ref = jnp.stack([forward_ref(speechs[g], params) for g in range(G)], axis=0)
    if not jnp.allclose(out, ref, atol=2e-4, rtol=2e-4):
        raise AssertionError(f"Pallas batched output mismatch vs reference:\n{out}\n{ref}")

    # Single-batch entry point (matches the PyTorch module signature exactly).
    out1 = jax.block_until_ready(jax.jit(forward)(speechs[0], sentences[0], params))
    ref1 = forward_ref(speechs[0], params)
    assert out1.shape == (B, N_CLASSES), out1.shape
    if not jnp.allclose(out1, ref1, atol=2e-4, rtol=2e-4):
        raise AssertionError(f"Pallas single-batch output mismatch vs reference:\n{out1}\n{ref1}")

    print("KERNEL_OK")
</pallas_src>

<mosaic_0001>
module attributes {stable_mosaic.version = 11 : i64} {
  func.func @speech_model_kernel(%arg0: i32, %arg1: memref<1x32x16xf32, #tpu.memory_space<vmem>>, %arg2: memref<424x128xf32, #tpu.memory_space<vmem>>, %arg3: memref<1x4x128xf32, #tpu.memory_space<vmem>>) attributes {dimension_semantics = [#tpu.dimension_semantics<parallel>], iteration_bounds = array<i64: 8>, scalar_prefetch = 0 : i64, scratch_operands = 0 : i64, tpu.core_type = #tpu.core_type<tc>, window_params = [{transform_indices = @transform_0, window_bounds = array<i64: 1, 32, 16>}, {pipeline_mode = #tpu.pipeline_mode<synchronous>, transform_indices = @transform_1, window_bounds = array<i64: 424, 128>}, {transform_indices = @transform_2, window_bounds = array<i64: 1, 4, 128>}]} {
    %c0 = arith.constant 0 : index
    %c0_0 = arith.constant 0 : index
    %0 = vector.load %arg2[%c0, %c0_0] : memref<424x128xf32, #tpu.memory_space<vmem>>, vector<16x32xf32>
    %c408 = arith.constant 408 : index
    %c0_1 = arith.constant 0 : index
    %1 = vector.load %arg2[%c408, %c0_1] : memref<424x128xf32, #tpu.memory_space<vmem>>, vector<1x32xf32>
    %c0_2 = arith.constant 0 : index
    %c0_3 = arith.constant 0 : index
    %c0_4 = arith.constant 0 : index
    %2 = vector.load %arg1[%c0_2, %c0_3, %c0_4] : memref<1x32x16xf32, #tpu.memory_space<vmem>>, vector<1x32x16xf32>
    %3 = vector.shape_cast %2 : vector<1x32x16xf32> to vector<32x16xf32>
    %cst = arith.constant dense<0.000000e+00> : vector<32x32xf32>
    %4 = tpu.matmul %3, %0, %cst {dimension_numbers = #tpu.dot_dimension_numbers<[1], [0], [0], [1], [0, 0, 1, 1], [], []>} : vector<32x16xf32>, vector<16x32xf32>, vector<32x32xf32> -> vector<32x32xf32>
    %5 = vector.broadcast %1 : vector<1x32xf32> to vector<32x32xf32>
    %6 = arith.addf %4, %5 : vector<32x32xf32>
    %cst_5 = arith.constant 0.000000e+00 : f32
    %7 = vector.broadcast %cst_5 : f32 to vector<32x32xf32>
    %8 = arith.maximumf %6, %7 : vector<32x32xf32>
    %c208 = arith.constant 208 : index
    %c0_6 = arith.constant 0 : index
    %9 = vector.load %arg2[%c208, %c0_6] : memref<424x128xf32, #tpu.memory_space<vmem>>, vector<32x32xf32>
    %10 = arith.mulf %8, %9 : vector<32x32xf32>
    %c240 = arith.constant 240 : index
    %c0_7 = arith.constant 0 : index
    %11 = vector.load %arg2[%c240, %c0_7] : memref<424x128xf32, #tpu.memory_space<vmem>>, vector<32x32xf32>
    %12 = arith.addf %10, %11 : vector<32x32xf32>
    %c16 = arith.constant 16 : index
    %c0_8 = arith.constant 0 : index
    %13 = vector.load %arg2[%c16, %c0_8] : memref<424x128xf32, #tpu.memory_space<vmem>>, vector<32x128xf32>
    %cst_9 = arith.constant dense<0.000000e+00> : vector<32x128xf32>
    %14 = tpu.matmul %12, %13, %cst_9 {dimension_numbers = #tpu.dot_dimension_numbers<[1], [0], [0], [1], [0, 0, 1, 1], [], []>} : vector<32x32xf32>, vector<32x128xf32>, vector<32x128xf32> -> vector<32x128xf32>
    %c409 = arith.constant 409 : index
    %c0_10 = arith.constant 0 : index
    %15 = vector.load %arg2[%c409, %c0_10] : memref<424x128xf32, #tpu.memory_space<vmem>>, vector<1x128xf32>
    %16 = vector.broadcast %15 : vector<1x128xf32> to vector<32x128xf32>
    %17 = arith.addf %14, %16 : vector<32x128xf32>
    %c48 = arith.constant 48 : index
    %c0_11 = arith.constant 0 : index
    %18 = vector.load %arg2[%c48, %c0_11] : memref<424x128xf32, #tpu.memory_space<vmem>>, vector<32x64xf32>
    %cst_12 = arith.constant dense<0.000000e+00> : vector<32x64xf32>
    %19 = tpu.matmul %12, %18, %cst_12 {dimension_numbers = #tpu.dot_dimension_numbers<[1], [0], [0], [1], [0, 0, 1, 1], [], []>} : vector<32x32xf32>, vector<32x64xf32>, vector<32x64xf32> -> vector<32x64xf32>
    %c410 = arith.constant 410 : index
    %c0_13 = arith.constant 0 : index
    %20 = vector.load %arg2[%c410, %c0_13] : memref<424x128xf32, #tpu.memory_space<vmem>>, vector<1x64xf32>
    %21 = vector.broadcast %20 : vector<1x64xf32> to vector<32x64xf32>
    %22 = arith.addf %19, %21 : vector<32x64xf32>
    %23 = vector.extract_strided_slice %22 {offsets = [0, 0], sizes = [32, 32], strides = [1, 1]} : vector<32x64xf32> to vector<32x32xf32>
    %24 = vector.extract_strided_slice %22 {offsets = [0, 32], sizes = [32, 32], strides = [1, 1]} : vector<32x64xf32> to vector<32x32xf32>
    %25 = vector.extract_strided_slice %17 {offsets = [0, 0], sizes = [32, 32], strides = [1, 1]} : vector<32x128xf32> to vector<32x32xf32>
    %26 = vector.extract_strided_slice %17 {offsets = [0, 32], sizes = [32, 32], strides = [1, 1]} : vector<32x128xf32> to vector<32x32xf32>
    %27 = vector.extract_strided_slice %17 {offsets = [0, 64], sizes = [32, 32], strides = [1, 1]} : vector<32x128xf32> to vector<32x32xf32>
    %28 = vector.extract_strided_slice %17 {offsets = [0, 96], sizes = [32, 32], strides = [1, 1]} : vector<32x128xf32> to vector<32x32xf32>
    %29 = tpu.concatenate %25, %26, %27, %28 in 0 : vector<32x32xf32>, vector<32x32xf32>, vector<32x32xf32>, vector<32x32xf32> -> vector<128x32xf32>
    %cst_14 = arith.constant dense<0.000000e+00> : vector<128x32xf32>
    %30 = tpu.matmul %29, %23, %cst_14 {dimension_numbers = #tpu.dot_dimension_numbers<[1], [1], [0], [0], [0, 0, 1, 0], [], []>} : vector<128x32xf32>, vector<32x32xf32>, vector<128x32xf32> -> vector<128x32xf32>
    %c272 = arith.constant 272 : index
    %c0_15 = arith.constant 0 : index
    %31 = vector.load %arg2[%c272, %c0_15] : memref<424x128xf32, #tpu.memory_space<vmem>>, vector<128x32xf32>
    %32 = arith.addf %30, %31 : vector<128x32xf32>
    %cst_16 = arith.constant dense<0xFF800000> : vector<128xf32>
    %33 = vector.multi_reduction <maximumf>, %32, %cst_16 [1] : vector<128x32xf32> to vector<128xf32>
    %34 = vector.shape_cast %33 : vector<128xf32> to vector<128x1xf32>
    %35 = vector.broadcast %34 : vector<128x1xf32> to vector<128x32xf32>
    %36 = arith.subf %32, %35 : vector<128x32xf32>
    %37 = math.exp %36 : vector<128x32xf32>
    %cst_17 = arith.constant dense<0.000000e+00> : vector<128xf32>
    %38 = vector.multi_reduction <add>, %37, %cst_17 [1] : vector<128x32xf32> to vector<128xf32>
    %39 = vector.shape_cast %38 : vector<128xf32> to vector<128x1xf32>
    %40 = tpu.reciprocal %39 : vector<128x1xf32> -> vector<128x1xf32>
    %41 = vector.broadcast %40 : vector<128x1xf32> to vector<128x32xf32>
    %42 = arith.mulf %37, %41 : vector<128x32xf32>
    %cst_18 = arith.constant dense<0.000000e+00> : vector<128x32xf32>
    %43 = tpu.matmul %42, %24, %cst_18 {dimension_numbers = #tpu.dot_dimension_numbers<[1], [0], [0], [1], [0, 0, 1, 1], [], []>} : vector<128x32xf32>, vector<32x32xf32>, vector<128x32xf32> -> vector<128x32xf32>
    %c404 = arith.constant 404 : index
    %c0_19 = arith.constant 0 : index
    %44 = vector.load %arg2[%c404, %c0_19] : memref<424x128xf32, #tpu.memory_space<vmem>>, vector<4x32xf32>
    %45 = vector.extract_strided_slice %44 {offsets = [0, 0], sizes = [1, 32], strides = [1, 1]} : vector<4x32xf32> to vector<1x32xf32>
    %46 = vector.extract_strided_slice %43 {offsets = [0, 0], sizes = [32, 32], strides = [1, 1]} : vector<128x32xf32> to vector<32x32xf32>
    %47 = vector.broadcast %45 : vector<1x32xf32> to vector<32x32xf32>
    %48 = arith.mulf %47, %46 : vector<32x32xf32>
    %49 = vector.extract_strided_slice %44 {offsets = [1, 0], sizes = [1, 32], strides = [1, 1]} : vector<4x32xf32> to vector<1x32xf32>
    %50 = vector.extract_strided_slice %43 {offsets = [32, 0], sizes = [32, 32], strides = [1, 1]} : vector<128x32xf32> to vector<32x32xf32>
    %51 = vector.broadcast %49 : vector<1x32xf32> to vector<32x32xf32>
    %52 = arith.mulf %51, %50 : vector<32x32xf32>
    %53 = arith.addf %48, %52 : vector<32x32xf32>
    %54 = vector.extract_strided_slice %44 {offsets = [2, 0], sizes = [1, 32], strides = [1, 1]} : vector<4x32xf32> to vector<1x32xf32>
    %55 = vector.extract_strided_slice %43 {offsets = [64, 0], sizes = [32, 32], strides = [1, 1]} : vector<128x32xf32> to vector<32x32xf32>
    %56 = vector.broadcast %54 : vector<1x32xf32> to vector<32x32xf32>
    %57 = arith.mulf %56, %55 : vector<32x32xf32>
    %58 = arith.addf %53, %57 : vector<32x32xf32>
    %59 = vector.extract_strided_slice %44 {offsets = [3, 0], sizes = [1, 32], strides = [1, 1]} : vector<4x32xf32> to vector<1x32xf32>
    %60 = vector.extract_strided_slice %43 {offsets = [96, 0], sizes = [32, 32], strides = [1, 1]} : vector<128x32xf32> to vector<32x32xf32>
    %61 = vector.broadcast %59 : vector<1x32xf32> to vector<32x32xf32>
    %62 = arith.mulf %61, %60 : vector<32x32xf32>
    %63 = arith.addf %58, %62 : vector<32x32xf32>
    %c80 = arith.constant 80 : index
    %c0_20 = arith.constant 0 : index
    %64 = vector.load %arg2[%c80, %c0_20] : memref<424x128xf32, #tpu.memory_space<vmem>>, vector<32x32xf32>
    %cst_21 = arith.constant dense<0.000000e+00> : vector<32x32xf32>
    %65 = tpu.matmul %63, %64, %cst_21 {dimension_numbers = #tpu.dot_dimension_numbers<[1], [0], [0], [1], [0, 0, 1, 1], [], []>} : vector<32x32xf32>, vector<32x32xf32>, vector<32x32xf32> -> vector<32x32xf32>
    %c411 = arith.constant 411 : index
    %c0_22 = arith.constant 0 : index
    %66 = vector.load %arg2[%c411, %c0_22] : memref<424x128xf32, #tpu.memory_space<vmem>>, vector<1x32xf32>
    %67 = vector.broadcast %66 : vector<1x32xf32> to vector<32x32xf32>
    %68 = arith.addf %65, %67 : vector<32x32xf32>
    %c112 = arith.constant 112 : index
    %c0_23 = arith.constant 0 : index
    %69 = vector.load %arg2[%c112, %c0_23] : memref<424x128xf32, #tpu.memory_space<vmem>>, vector<32x32xf32>
    %cst_24 = arith.constant dense<0.000000e+00> : vector<32x32xf32>
    %70 = tpu.matmul %68, %69, %cst_24 {dimension_numbers = #tpu.dot_dimension_numbers<[1], [0], [0], [1], [0, 0, 1, 1], [], []>} : vector<32x32xf32>, vector<32x32xf32>, vector<32x32xf32> -> vector<32x32xf32>
    %c412 = arith.constant 412 : index
    %c0_25 = arith.constant 0 : index
    %71 = vector.load %arg2[%c412, %c0_25] : memref<424x128xf32, #tpu.memory_space<vmem>>, vector<1x32xf32>
    %72 = vector.broadcast %71 : vector<1x32xf32> to vector<32x32xf32>
    %73 = arith.addf %70, %72 : vector<32x32xf32>
    %cst_26 = arith.constant 0.000000e+00 : f32
    %74 = vector.broadcast %cst_26 : f32 to vector<32x32xf32>
    %75 = arith.maximumf %73, %74 : vector<32x32xf32>
    %c413 = arith.constant 413 : index
    %c0_27 = arith.constant 0 : index
    %76 = vector.load %arg2[%c413, %c0_27] : memref<424x128xf32, #tpu.memory_space<vmem>>, vector<1x32xf32>
    %77 = vector.broadcast %76 : vector<1x32xf32> to vector<32x32xf32>
    %78 = arith.mulf %75, %77 : vector<32x32xf32>
    %cst_28 = arith.constant dense<0.000000e+00> : vector<32xf32>
    %79 = vector.multi_reduction <add>, %78, %cst_28 [1] : vector<32x32xf32> to vector<32xf32>
    %80 = vector.shape_cast %79 : vector<32xf32> to vector<32x1xf32>
    %c414 = arith.constant 414 : index
    %c0_29 = arith.constant 0 : index
    %81 = vector.load %arg2[%c414, %c0_29] : memref<424x128xf32, #tpu.memory_space<vmem>>, vector<1x1xf32>
    %82 = vector.broadcast %81 : vector<1x1xf32> to vector<32x1xf32>
    %83 = arith.addf %80, %82 : vector<32x1xf32>
    %84 = vector.shape_cast %83 : vector<32x1xf32> to vector<1x32x1xf32>
    %cst_30 = arith.constant dense<0xFF800000> : vector<1xf32>
    %85 = vector.multi_reduction <maximumf>, %84, %cst_30 [1, 2] : vector<1x32x1xf32> to vector<1xf32>
    %86 = vector.shape_cast %85 : vector<1xf32> to vector<1x1x1xf32>
    %87 = vector.extract %86[0, 0, 0] : f32 from vector<1x1x1xf32>
    %88 = vector.broadcast %87 : f32 to vector<1x1xf32>
    %89 = vector.broadcast %88 : vector<1x1xf32> to vector<32x1xf32>
    %90 = arith.subf %83, %89 : vector<32x1xf32>
    %91 = math.exp %90 : vector<32x1xf32>
    %c400 = arith.constant 400 : index
    %c0_31 = arith.constant 0 : index
    %92 = vector.load %arg2[%c400, %c0_31] : memref<424x128xf32, #tpu.memory_space<vmem>>, vector<4x32xf32>
    %93 = vector.broadcast %91 : vector<32x1xf32> to vector<32x32xf32>
    %94 = arith.mulf %68, %93 : vector<32x32xf32>
    %cst_32 = arith.constant dense<0.000000e+00> : vector<4x32xf32>
    %95 = tpu.matmul %92, %94, %cst_32 {dimension_numbers = #tpu.dot_dimension_numbers<[1], [0], [0], [1], [0, 0, 1, 1], [], []>} : vector<4x32xf32>, vector<32x32xf32>, vector<4x32xf32> -> vector<4x32xf32>
    %cst_33 = arith.constant dense<0.000000e+00> : vector<4x1xf32>
    %96 = tpu.matmul %92, %91, %cst_33 {dimension_numbers = #tpu.dot_dimension_numbers<[1], [0], [0], [1], [0, 0, 1, 1], [], []>} : vector<4x32xf32>, vector<32x1xf32>, vector<4x1xf32> -> vector<4x1xf32>
    %97 = tpu.reciprocal %96 : vector<4x1xf32> -> vector<4x1xf32>
    %98 = vector.broadcast %97 : vector<4x1xf32> to vector<4x32xf32>
    %99 = arith.mulf %95, %98 : vector<4x32xf32>
    %c144 = arith.constant 144 : index
    %c0_34 = arith.constant 0 : index
    %100 = vector.load %arg2[%c144, %c0_34] : memref<424x128xf32, #tpu.memory_space<vmem>>, vector<32x32xf32>
    %cst_35 = arith.constant dense<0.000000e+00> : vector<4x32xf32>
    %101 = tpu.matmul %99, %100, %cst_35 {dimension_numbers = #tpu.dot_dimension_numbers<[1], [0], [0], [1], [0, 0, 1, 1], [], []>} : vector<4x32xf32>, vector<32x32xf32>, vector<4x32xf32> -> vector<4x32xf32>
    %c415 = arith.constant 415 : index
    %c0_36 = arith.constant 0 : index
    %102 = vector.load %arg2[%c415, %c0_36] : memref<424x128xf32, #tpu.memory_space<vmem>>, vector<1x32xf32>
    %103 = vector.broadcast %102 : vector<1x32xf32> to vector<4x32xf32>
    %104 = arith.addf %101, %103 : vector<4x32xf32>
    %cst_37 = arith.constant 0.000000e+00 : f32
    %105 = vector.broadcast %cst_37 : f32 to vector<4x32xf32>
    %106 = arith.maximumf %104, %105 : vector<4x32xf32>
    %c176 = arith.constant 176 : index
    %c0_38 = arith.constant 0 : index
    %107 = vector.load %arg2[%c176, %c0_38] : memref<424x128xf32, #tpu.memory_space<vmem>>, vector<32x128xf32>
    %cst_39 = arith.constant dense<0.000000e+00> : vector<4x128xf32>
    %108 = tpu.matmul %106, %107, %cst_39 {dimension_numbers = #tpu.dot_dimension_numbers<[1], [0], [0], [1], [0, 0, 1, 1], [], []>} : vector<4x32xf32>, vector<32x128xf32>, vector<4x128xf32> -> vector<4x128xf32>
    %c416 = arith.constant 416 : index
    %c0_40 = arith.constant 0 : index
    %109 = vector.load %arg2[%c416, %c0_40] : memref<424x128xf32, #tpu.memory_space<vmem>>, vector<1x128xf32>
    %110 = vector.broadcast %109 : vector<1x128xf32> to vector<4x128xf32>
    %111 = arith.addf %108, %110 : vector<4x128xf32>
    %c0_41 = arith.constant 0 : index
    %c0_42 = arith.constant 0 : index
    %c0_43 = arith.constant 0 : index
    %112 = vector.load %arg3[%c0_41, %c0_42, %c0_43] : memref<1x4x128xf32, #tpu.memory_space<vmem>>, vector<1x4x128xf32>
    %113 = vector.shape_cast %112 : vector<1x4x128xf32> to vector<4x128xf32>
    %114 = vector.shape_cast %111 : vector<4x128xf32> to vector<1x4x128xf32>
    tpu.vector_store %arg3[%c0_41, %c0_42, %c0_43], %114 {strides = array<i32>} : memref<1x4x128xf32, #tpu.memory_space<vmem>>, vector<1x4x128xf32>,
    return
  }
  func.func @transform_0(%arg0: i32) -> (i32, i32, i32) {
    %c0_i32 = arith.constant 0 : i32
    %c0_i32_0 = arith.constant 0 : i32
    %c0_i32_1 = arith.constant 0 : i32
    return %arg0, %c0_i32, %c0_i32_0 : i32, i32, i32
  }
  func.func @transform_1(%arg0: i32) -> (i32, i32) {
    %c0_i32 = arith.constant 0 : i32
    %c0_i32_0 = arith.constant 0 : i32
    %c0_i32_1 = arith.constant 0 : i32
    return %c0_i32, %c0_i32_0 : i32, i32
  }
  func.func @transform_2(%arg0: i32) -> (i32, i32, i32) {
    %c0_i32 = arith.constant 0 : i32
    %c0_i32_0 = arith.constant 0 : i32
    %c0_i32_1 = arith.constant 0 : i32
    return %arg0, %c0_i32, %c0_i32_0 : i32, i32, i32
  }
}

</mosaic_0001>

<llo_original>
// kernel: forward_batched.1
$region0: #{forward_batched.1}
  #allocation0 [shape = 'u32[]', space=smem, size = 0x4, offset = 0x4, fixed_abs, tag = 'smem constant byte address 0x4 - core index']
  #allocation1 [shape = 'u32[144,128]{1,0:T(1,128)}', space=vmem, size = 0x12000, scoped, tag = 'internal scratch']
  %s0 = inlined_call_operand.hbm [shape: f32[8,32,16], index: 0, kind: input, shape index: {}]
  %s1 = inlined_call_operand.hbm [shape: f32[424,128], index: 1, kind: input, shape index: {}]
  %s2 = inlined_call_operand.vmem [shape: f32[8,4,128], index: 2, kind: output, shape index: {}]
  %s3 = sld [smem:[#allocation0]]
  $region49: #{forward_batched.1} parent=0
    _
  %s5 = ssub.s32 1, %s3
  %s6 = scalar_select 0, %s5, %s3
  $region1: #{forward_batched.1} parent=0
    #allocation2 [shape = 'u8[32768]{0}', space=vmem, size = 0x8000, scoped, tag = 'input window, operand 0']
    #allocation3 [shape = 's32[2]{0}', space=sflag, size = 0x8, scoped, tag = 'scoped memory for forward_batched.1']
    #allocation4 [shape = 'u8[217088]{0}', space=vmem, size = 0x35000, scoped, tag = 'input window, operand 1, single buffered']
    #allocation5 [shape = 's32[1]{0}', space=sflag, size = 0x4, scoped, tag = 'scoped memory for forward_batched.1']
    %7 = vsyncpa [#allocation3], 0
    %s8 = scalar_lea.sflag [#allocation3], 1
    %9 = vsyncpa %s8, 0
    %10 = vsyncpa [#allocation5], 0
    loop: start=0, step=1, limit=10
    $region2: #{forward_batched.1} parent=1 // loop_pre_header
      _
    $region3: #{forward_batched.1} parent=1 // loop_header
      %s12 = sphi 0, %s16
      %p13 = scmp.ge.s32.totalorder %s12, 10
      %s22 = sphi 0, %s24
      %s25 = sphi 0, %s22
      %s26 = sphi 0, %s25
      %s42 = sphi 0, %s26
      %s46 = sphi 0, %s46
      %s48 = sphi 0, %s46
      %s49 = sphi 0, %s48
      %s63 = sphi 0, %s49
      %s69 = sphi 0, %s71
      %s72 = sphi 0, %s69
      %s73 = sphi 0, %s72
      %s89 = sphi 0, %s73
    $region4: #{forward_batched.1} parent=1 // loop_header_branch
      %15 = sbr.rel (%p13) target = $region8
    $region5: #{forward_batched.1} parent=1 // loop_body
      %s17 = ssub.s32 %s12, 1
      %s18 = ssub.s32 %s12, 2
      %s19 = sadd.s32 %s12, 1
      %s20 = ssub.s32 %s12, %s19
      %p21 = scmp.eq.s32.totalorder %s20, 0
      %s23 = sadd.s32 %s22, 1
      %s24 = scalar_select %p21, %s22, %s23
      %p27 = pneg %p21
      %p28 = scmp.eq.s32.totalorder %s12, 7
      %p29 = por %p27, %p28
      %p30 = scmp.ne.s32.totalorder %s22, %s25
      %p31 = scmp.eq.s32.totalorder %s12, 0
      %p32 = por %p30, %p31
      %p33 = scmp.ne.s32.totalorder %s22, %s25
      %p34 = scmp.eq.s32.totalorder %s17, 7
      %p35 = por %p33, %p34
      %p36 = scmp.ne.s32.totalorder %s25, %s26
      %p37 = scmp.eq.s32.totalorder %s17, 0
      %p38 = por %p36, %p37
      %p39 = scmp.ne.s32.totalorder %s25, %s26
      %p40 = scmp.eq.s32.totalorder %s18, 7
      %p41 = por %p39, %p40
      %p43 = scmp.ne.s32.totalorder %s26, %s42
      %p44 = scmp.eq.s32.totalorder %s18, 0
      %p45 = por %p43, %p44
      %s47 = sadd.s32 %s46, 1
      %p50 = scmp.eq.s32.totalorder %s12, 7
      %p51 = scmp.ne.s32.totalorder %s46, %s48
      %p52 = scmp.eq.s32.totalorder %s12, 0
      %p53 = por %p51, %p52
      %p54 = scmp.ne.s32.totalorder %s46, %s48
      %p55 = scmp.eq.s32.totalorder %s17, 7
      %p56 = por %p54, %p55
      %p57 = scmp.ne.s32.totalorder %s48, %s49
      %p58 = scmp.eq.s32.totalorder %s17, 0
      %p59 = por %p57, %p58
      %p60 = scmp.ne.s32.totalorder %s48, %s49
      %p61 = scmp.eq.s32.totalorder %s18, 7
      %p62 = por %p60, %p61
      %p64 = scmp.ne.s32.totalorder %s49, %s63
      %p65 = scmp.eq.s32.totalorder %s18, 0
      %p66 = por %p64, %p65
      %s67 = ssub.s32 %s12, %s19
      %p68 = scmp.eq.s32.totalorder %s67, 0
      %s70 = sadd.s32 %s69, 1
      %s71 = scalar_select %p68, %s69, %s70
      %p74 = pneg %p68
      %p75 = scmp.eq.s32.totalorder %s12, 7
      %p76 = por %p74, %p75
      %p77 = scmp.ne.s32.totalorder %s69, %s72
      %p78 = scmp.eq.s32.totalorder %s12, 0
      %p79 = por %p77, %p78
      %p80 = scmp.ne.s32.totalorder %s69, %s72
      %p81 = scmp.eq.s32.totalorder %s17, 7
      %p82 = por %p80, %p81
      %p83 = scmp.ne.s32.totalorder %s72, %s73
      %p84 = scmp.eq.s32.totalorder %s17, 0
      %p85 = por %p83, %p84
      %p86 = scmp.ne.s32.totalorder %s72, %s73
      %p87 = scmp.eq.s32.totalorder %s18, 7
      %p88 = por %p86, %p87
      %p90 = scmp.ne.s32.totalorder %s73, %s89
      %p91 = scmp.eq.s32.totalorder %s18, 0
      %p92 = por %p90, %p91
      %p93 = scmp.le.s32.totalorder 1, %s12
      %p94 = scmp.lt.s32.totalorder %s12, 9
      %p95 = pnand %p93, %p94
      %p96 = pneg %p95
      // Predicated region
      $region9: #{forward_batched.1} parent=5 // pred_check
        _
      $region10: #{forward_batched.1} parent=5 // pred_check_branch
        %98 = sbr.rel (%p95) target = $region12
      $region11: #{forward_batched.1} parent=5 // pred_region
        %s99 = ssub.s32 %s12, 1
        // Predicated region
        $region13: #{forward_batched.1} parent=11 // pred_check
          %p100 = pneg %p59
        $region14: #{forward_batched.1} parent=11 // pred_check_branch
          %102 = sbr.rel (%p100) target = $region16
        $region15: #{forward_batched.1} parent=11 // pred_region
          %s104 = ssub.s32 6784, 6784
          %105 = vsyncadd [#allocation5], %s104
          %s106 = sshll.u32 [#allocation4], 4
          %s107 = int_to_ptr.vmem [resolvable:$true] %s106
          %112 = dma.hbm_to_vmem [thread:$0]  %s1, 6784, %s107, [#allocation5], 128, 128, 8
        $region16: #{forward_batched.1} parent=11 // pred_fallthru
          _
      $region12: #{forward_batched.1} parent=5 // pred_fallthru
        _
      %p113 = scmp.lt.s32.totalorder %s12, 8
      // Predicated region
      $region17: #{forward_batched.1} parent=5 // pred_check
        %p114 = pneg %p113
      $region18: #{forward_batched.1} parent=5 // pred_check_branch
        %116 = sbr.rel (%p114) target = $region20
      $region19: #{forward_batched.1} parent=5 // pred_region
        // Predicated region
        $region21: #{forward_batched.1} parent=19 // pred_check
          %p117 = pneg %p32
        $region22: #{forward_batched.1} parent=19 // pred_check_branch
          %119 = sbr.rel (%p117) target = $region24
        $region23: #{forward_batched.1} parent=19 // pred_region
          %s120 = sand.u32 %s22, 1
          %s121 = scalar_lea.sflag [#allocation3], %s120
          %s122 = sand.u32 %s22, 1
          %s123 = smul.addr %s122, 32
          %s124 = scalar_lea.vmem [#allocation2], %s123
          %s126 = ssub.s32 512, 512
          %127 = vsyncadd %s121, %s126
          %s128 = smul.addr %s12, 4
          %s129 = smul.addr %s128, 128
          %s130 = scalar_lea.hbm %s0, %s129
          %s131 = sshll.u32 %s124, 4
          %s132 = int_to_ptr.vmem [resolvable:$true] %s131
          %137 = dma.hbm_to_vmem [thread:$0]  %s130, 512, %s132, %s121, 128, 128, 8
        $region24: #{forward_batched.1} parent=19 // pred_fallthru
          _
      $region20: #{forward_batched.1} parent=5 // pred_fallthru
        _
      %p138 = scmp.le.s32.totalorder 1, %s12
      %p139 = scmp.lt.s32.totalorder %s12, 9
      %p140 = pnand %p138, %p139
      %p141 = pneg %p140
      // Predicated region
      $region25: #{forward_batched.1} parent=5 // pred_check
        _
      $region26: #{forward_batched.1} parent=5 // pred_check_branch
        %143 = sbr.rel (%p140) target = $region28
      $region27: #{forward_batched.1} parent=5 // pred_region
        %s144 = ssub.s32 %s12, 1
        %s145 = sand.u32 %s25, 1
        %s146 = scalar_lea.sflag [#allocation3], %s145
        %s147 = sand.u32 %s25, 1
        %s148 = smul.addr %s147, 32
        %s149 = scalar_lea.vmem [#allocation2], %s148
        // Predicated region
        $region29: #{forward_batched.1} parent=27 // pred_check
          %p150 = pneg %p38
        $region30: #{forward_batched.1} parent=27 // pred_check_branch
          %152 = sbr.rel (%p150) target = $region32
        $region31: #{forward_batched.1} parent=27 // pred_region
          %153 = dma.done %s146, 512
        $region32: #{forward_batched.1} parent=27 // pred_fallthru
          _
        // Predicated region
        $region33: #{forward_batched.1} parent=27 // pred_check
          %p154 = pneg %p59
        $region34: #{forward_batched.1} parent=27 // pred_check_branch
          %156 = sbr.rel (%p154) target = $region36
        $region35: #{forward_batched.1} parent=27 // pred_region
          %157 = dma.done [#allocation5], 6784
        $region36: #{forward_batched.1} parent=27 // pred_fallthru
          _
        %s158 = sand.u32 %s25, 1
        %s159 = scalar_lea.sflag [#allocation3], %s158
        %s160 = sand.u32 %s25, 1
        %s161 = smul.addr %s160, 32
        %s162 = scalar_lea.vmem [#allocation2], %s161
        %p163 = pneg %p38
        %p164 = pneg %p35
        %p165 = pneg %p59
        %p166 = pneg %p56
        %p167 = pneg %p85
        %p168 = pneg %p82
        %p169 = scmp.lt.s32.totalorder %s17, 7
        %s170 = scalar_select %p169, %s17, 7
        %s171 = smul.addr %s170, 4
        %s172 = scalar_lea.vmem %s2, %s171
        %p173 = scmp.lt.s32.totalorder %s17, 7
        %s174 = scalar_select %p173, %s17, 7
        %s175 = smul.addr %s174, 4
        %s176 = scalar_lea.vmem %s2, %s175
        %v177 = vld [vmem:[#allocation4] sm:$0xff]
        %v178 = vld [vmem:[#allocation4 + $0x8] sm:$0xff]
        %v179 = vld [vmem:[#allocation4 + $0x198] sm:$0x1]
        %v180 = vld [vmem:[%s149] sm:$0xff]
        %v181 = vld [vmem:[%s149 + $0x8] sm:$0xff]
        %v182 = vld [vmem:[%s149 + $0x10] sm:$0xff]
        %v183 = vld [vmem:[%s149 + $0x18] sm:$0xff]
        %v184 = vlaneseq
        %v185 = vshrl.u32 %v184, 7
        %v186 = vsub.s32 0, %v185
        %v187 = vrot.slane %v179, %v186
        %vm188 = vcmask 130048
        %v190 = vsel %vm188, %v180, 0
        %v193 = vsel %vm188, %v181, 0
        %v196 = vsel %vm188, %v182, 0
        %v199 = vsel %vm188, %v183, 0
        %201 = vmatprep.subr.mxu0 0.0
        %202 = vmatpush1.msra.mxu0 %v177
        %203 = vmatprep.subr.mxu0 0.0
        %204 = vmatpush1.msra.mxu0 %v178
        %205 = vmatprep.subr.mxu0 0.0
        %206 = vmatpush1.msra.mxu0 0.0
        %207 = vmatprep.subr.mxu0 0.0
        %208 = vmatpush1.msra.mxu0 0.0
        %209 = vmatprep.subr.mxu0 0.0
        %210 = vmatpush1.msra.mxu0 0.0
        %211 = vmatprep.subr.mxu0 0.0
        %212 = vmatpush1.msra.mxu0 0.0
        %213 = vmatprep.subr.mxu0 0.0
        %214 = vmatpush1.msra.mxu0 0.0
        %215 = vmatprep.subr.mxu0 0.0
        %216 = vmatpush1.msra.mxu0 0.0
        %217 = vmatprep.subr.mxu0 0.0
        %218 = vmatpush1.msra.mxu0 0.0
        %219 = vmatprep.subr.mxu0 0.0
        %220 = vmatpush1.msra.mxu0 0.0
        %221 = vmatprep.subr.mxu0 0.0
        %222 = vmatpush1.msra.mxu0 0.0
        %223 = vmatprep.subr.mxu0 0.0
        %224 = vmatpush1.msra.mxu0 0.0
        %225 = vmatprep.subr.mxu0 0.0
        %226 = vmatpush1.msra.mxu0 0.0
        %227 = vmatprep.subr.mxu0 0.0
        %228 = vmatpush1.msra.mxu0 0.0
        %229 = vmatprep.subr.mxu0 0.0
        %230 = vmatpush1.msra.mxu0 0.0
        %231 = vmatprep.subr.mxu0 0.0
        %232 = vmatpush1.msra.mxu0 0.0
        %233 = vmatprep.subr.mxu0 0.0
        %234 = vmatpush1.msra.mxu0 0.0
        %235 = vmatprep.subr.mxu0 0.0
        %236 = vmatpush1.msra.mxu0 0.0
        %237 = vmatprep.subr.mxu0 0.0
        %238 = vmatpush1.msra.mxu0 0.0
        %239 = vmatprep.subr.mxu0 0.0
        %240 = vmatpush1.msra.mxu0 0.0
        %241 = vmatprep.subr.mxu0 0.0
        %242 = vmatpush1.msra.mxu0 0.0
        %243 = vmatprep.subr.mxu0 0.0
        %244 = vmatpush1.msra.mxu0 0.0
        %245 = vmatprep.subr.mxu0 0.0
        %246 = vmatpush1.msra.mxu0 0.0
        %247 = vmatprep.subr.mxu0 0.0
        %248 = vmatpush1.msra.mxu0 0.0
        %249 = vmatprep.subr.mxu0 0.0
        %250 = vmatpush1.msra.mxu0 0.0
        %251 = vmatprep.subr.mxu0 0.0
        %252 = vmatpush1.msra.mxu0 0.0
        %253 = vmatprep.subr.mxu0 0.0
        %254 = vmatpush1.msra.mxu0 0.0
        %255 = vmatprep.subr.mxu0 0.0
        %256 = vmatpush1.msra.mxu0 0.0
        %257 = vmatprep.subr.mxu0 0.0
        %258 = vmatpush1.msra.mxu0 0.0
        %259 = vmatprep.subr.mxu0 0.0
        %260 = vmatpush1.msra.mxu0 0.0
        %261 = vmatprep.subr.mxu0 0.0
        %262 = vmatpush1.msra.mxu0 0.0
        %263 = vmatprep.subr.mxu0 0.0
        %264 = vmatpush1.msra.mxu0 0.0
        %265 = vmatprep.mubr.f32.mxu0 0.0
        %266 = vmatmul.mubr.f32.gmra.mrb[0].mxu0 %v190
        %v267 = vpop.f32.mrb[0].mxu0
        %v268 = vadd.f32 %v187, %v267
        %v269 = vpop.f32.mrb[0].mxu0
        %270 = vmatprep.mubr.f32.mxu0 0.0
        %271 = vmatmul.mubr.f32.gmra.mrb[0].mxu0 %v193
        %v272 = vpop.f32.mrb[0].mxu0
        %v273 = vadd.f32 %v187, %v272
        %v274 = vpop.f32.mrb[0].mxu0
        %275 = vmatprep.mubr.f32.mxu0 0.0
        %276 = vmatmul.mubr.f32.gmra.mrb[0].mxu0 %v196
        %v277 = vpop.f32.mrb[0].mxu0
        %v278 = vadd.f32 %v187, %v277
        %v279 = vpop.f32.mrb[0].mxu0
        %280 = vmatprep.mubr.f32.mxu0 0.0
        %281 = vmatmul.mubr.f32.gmra.mrb[0].mxu0 %v199
        %v282 = vpop.f32.mrb[0].mxu0
        %v283 = vadd.f32 %v187, %v282
        %v284 = vpop.f32.mrb[0].mxu0
        %285 = vdwg.mxu0
        %v286 = vmax.f32 %v268, 0.0
        %v287 = vmax.f32 %v273, 0.0
        %v288 = vmax.f32 %v278, 0.0
        %v289 = vmax.f32 %v283, 0.0
        %v290 = vld [vmem:[#allocation4 + $0xd0] sm:$0xff]
        %v291 = vld [vmem:[#allocation4 + $0xd8] sm:$0xff]
        %v292 = vld [vmem:[#allocation4 + $0xe0] sm:$0xff]
        %v293 = vld [vmem:[#allocation4 + $0xe8] sm:$0xff]
        %v294 = vmul.f32 %v286, %v290
        %v295 = vmul.f32 %v287, %v291
        %v296 = vmul.f32 %v288, %v292
        %v297 = vmul.f32 %v289, %v293
        %v298 = vld [vmem:[#allocation4 + $0xf0] sm:$0xff]
        %v299 = vld [vmem:[#allocation4 + $0xf8] sm:$0xff]
        %v300 = vld [vmem:[#allocation4 + $0x100] sm:$0xff]
        %v301 = vld [vmem:[#allocation4 + $0x108] sm:$0xff]
        %v302 = vadd.f32 %v294, %v298
        %v303 = vadd.f32 %v295, %v299
        %v304 = vadd.f32 %v296, %v300
        %v305 = vadd.f32 %v297, %v301
        %v306 = vld [vmem:[#allocation4 + $0x10] sm:$0xff]
        %v307 = vld [vmem:[#allocation4 + $0x18] sm:$0xff]
        %v308 = vld [vmem:[#allocation4 + $0x20] sm:$0xff]
        %v309 = vld [vmem:[#allocation4 + $0x28] sm:$0xff]
        %v310 = vld [vmem:[#allocation4 + $0x199] sm:$0x1]
        %v311 = vlaneseq
        %v312 = vshrl.u32 %v311, 7
        %v313 = vsub.s32 0, %v312
        %v314 = vrot.slane %v310, %v313
        %vm315 = vcmask 261120
        %v317 = vsel %vm315, %v302, 0
        %v320 = vsel %vm315, %v303, 0
        %v323 = vsel %vm315, %v304, 0
        %v326 = vsel %vm315, %v305, 0
        %328 = vmatprep.subr.mxu0 0.0
        %329 = vmatpush1.msra.mxu0 %v306
        %330 = vmatprep.subr.mxu0 0.0
        %331 = vmatpush1.msra.mxu0 %v307
        %332 = vmatprep.subr.mxu0 0.0
        %333 = vmatpush1.msra.mxu0 %v308
        %334 = vmatprep.subr.mxu0 0.0
        %335 = vmatpush1.msra.mxu0 %v309
        %336 = vmatprep.subr.mxu0 0.0
        %337 = vmatpush1.msra.mxu0 0.0
        %338 = vmatprep.subr.mxu0 0.0
        %339 = vmatpush1.msra.mxu0 0.0
        %340 = vmatprep.subr.mxu0 0.0
        %341 = vmatpush1.msra.mxu0 0.0
        %342 = vmatprep.subr.mxu0 0.0
        %343 = vmatpush1.msra.mxu0 0.0
        %344 = vmatprep.subr.mxu0 0.0
        %345 = vmatpush1.msra.mxu0 0.0
        %346 = vmatprep.subr.mxu0 0.0
        %347 = vmatpush1.msra.mxu0 0.0
        %348 = vmatprep.subr.mxu0 0.0
        %349 = vmatpush1.msra.mxu0 0.0
        %350 = vmatprep.subr.mxu0 0.0
        %351 = vmatpush1.msra.mxu0 0.0
        %352 = vmatprep.subr.mxu0 0.0
        %353 = vmatpush1.msra.mxu0 0.0
        %354 = vmatprep.subr.mxu0 0.0
        %355 = vmatpush1.msra.mxu0 0.0
        %356 = vmatprep.subr.mxu0 0.0
        %357 = vmatpush1.msra.mxu0 0.0
        %358 = vmatprep.subr.mxu0 0.0
        %359 = vmatpush1.msra.mxu0 0.0
        %360 = vmatprep.subr.mxu0 0.0
        %361 = vmatpush1.msra.mxu0 0.0
        %362 = vmatprep.subr.mxu0 0.0
        %363 = vmatpush1.msra.mxu0 0.0
        %364 = vmatprep.subr.mxu0 0.0
        %365 = vmatpush1.msra.mxu0 0.0
        %366 = vmatprep.subr.mxu0 0.0
        %367 = vmatpush1.msra.mxu0 0.0
        %368 = vmatprep.subr.mxu0 0.0
        %369 = vmatpush1.msra.mxu0 0.0
        %370 = vmatprep.subr.mxu0 0.0
        %371 = vmatpush1.msra.mxu0 0.0
        %372 = vmatprep.subr.mxu0 0.0
        %373 = vmatpush1.msra.mxu0 0.0
        %374 = vmatprep.subr.mxu0 0.0
        %375 = vmatpush1.msra.mxu0 0.0
        %376 = vmatprep.subr.mxu0 0.0
        %377 = vmatpush1.msra.mxu0 0.0
        %378 = vmatprep.subr.mxu0 0.0
        %379 = vmatpush1.msra.mxu0 0.0
        %380 = vmatprep.subr.mxu0 0.0
        %381 = vmatpush1.msra.mxu0 0.0
        %382 = vmatprep.subr.mxu0 0.0
        %383 = vmatpush1.msra.mxu0 0.0
        %384 = vmatprep.subr.mxu0 0.0
        %385 = vmatpush1.msra.mxu0 0.0
        %386 = vmatprep.subr.mxu0 0.0
        %387 = vmatpush1.msra.mxu0 0.0
        %388 = vmatprep.subr.mxu0 0.0
        %389 = vmatpush1.msra.mxu0 0.0
        %390 = vmatprep.subr.mxu0 0.0
        %391 = vmatpush1.msra.mxu0 0.0
        %392 = vmatprep.mubr.f32.mxu0 0.0
        %393 = vmatmul.mubr.f32.gmra.mrb[0].mxu0 %v317
        %v394 = vpop.f32.mrb[0].mxu0
        %v395 = vadd.f32 %v314, %v394
        %v396 = vpop.f32.mrb[0].mxu0
        %397 = vmatprep.mubr.f32.mxu0 0.0
        %398 = vmatmul.mubr.f32.gmra.mrb[0].mxu0 %v320
        %v399 = vpop.f32.mrb[0].mxu0
        %v400 = vadd.f32 %v314, %v399
        %v401 = vpop.f32.mrb[0].mxu0
        %402 = vmatprep.mubr.f32.mxu0 0.0
        %403 = vmatmul.mubr.f32.gmra.mrb[0].mxu0 %v323
        %v404 = vpop.f32.mrb[0].mxu0
        %v405 = vadd.f32 %v314, %v404
        %v406 = vpop.f32.mrb[0].mxu0
        %407 = vmatprep.mubr.f32.mxu0 0.0
        %408 = vmatmul.mubr.f32.gmra.mrb[0].mxu0 %v326
        %v409 = vpop.f32.mrb[0].mxu0
        %v410 = vadd.f32 %v314, %v409
        %v411 = vpop.f32.mrb[0].mxu0
        %412 = vdwg.mxu0
        %v413 = vld [vmem:[#allocation4 + $0x30] sm:$0xff]
        %v414 = vld [vmem:[#allocation4 + $0x38] sm:$0xff]
        %v415 = vld [vmem:[#allocation4 + $0x40] sm:$0xff]
        %v416 = vld [vmem:[#allocation4 + $0x48] sm:$0xff]
        %v417 = vld [vmem:[#allocation4 + $0x19a] sm:$0x1]
        %v418 = vlaneseq
        %v419 = vshrl.u32 %v418, 7
        %v420 = vsub.s32 0, %v419
        %v421 = vrot.slane %v417, %v420
        %422 = vmatprep.subr.mxu0 0.0
        %423 = vmatpush1.msra.mxu0 %v413
        %424 = vmatprep.subr.mxu0 0.0
        %425 = vmatpush1.msra.mxu0 %v414
        %426 = vmatprep.subr.mxu0 0.0
        %427 = vmatpush1.msra.mxu0 %v415
        %428 = vmatprep.subr.mxu0 0.0
        %429 = vmatpush1.msra.mxu0 %v416
        %430 = vmatprep.subr.mxu0 0.0
        %431 = vmatpush1.msra.mxu0 0.0
        %432 = vmatprep.subr.mxu0 0.0
        %433 = vmatpush1.msra.mxu0 0.0
        %434 = vmatprep.subr.mxu0 0.0
        %435 = vmatpush1.msra.mxu0 0.0
        %436 = vmatprep.subr.mxu0 0.0
        %437 = vmatpush1.msra.mxu0 0.0
        %438 = vmatprep.subr.mxu0 0.0
        %439 = vmatpush1.msra.mxu0 0.0
        %440 = vmatprep.subr.mxu0 0.0
        %441 = vmatpush1.msra.mxu0 0.0
        %442 = vmatprep.subr.mxu0 0.0
        %443 = vmatpush1.msra.mxu0 0.0
        %444 = vmatprep.subr.mxu0 0.0
        %445 = vmatpush1.msra.mxu0 0.0
        %446 = vmatprep.subr.mxu0 0.0
        %447 = vmatpush1.msra.mxu0 0.0
        %448 = vmatprep.subr.mxu0 0.0
        %449 = vmatpush1.msra.mxu0 0.0
        %450 = vmatprep.subr.mxu0 0.0
        %451 = vmatpush1.msra.mxu0 0.0
        %452 = vmatprep.subr.mxu0 0.0
        %453 = vmatpush1.msra.mxu0 0.0
        %454 = vmatprep.subr.mxu0 0.0
        %455 = vmatpush1.msra.mxu0 0.0
        %456 = vmatprep.subr.mxu0 0.0
        %457 = vmatpush1.msra.mxu0 0.0
        %458 = vmatprep.subr.mxu0 0.0
        %459 = vmatpush1.msra.mxu0 0.0
        %460 = vmatprep.subr.mxu0 0.0
        %461 = vmatpush1.msra.mxu0 0.0
        %462 = vmatprep.subr.mxu0 0.0
        %463 = vmatpush1.msra.mxu0 0.0
        %464 = vmatprep.subr.mxu0 0.0
        %465 = vmatpush1.msra.mxu0 0.0
        %466 = vmatprep.subr.mxu0 0.0
        %467 = vmatpush1.msra.mxu0 0.0
        %468 = vmatprep.subr.mxu0 0.0
        %469 = vmatpush1.msra.mxu0 0.0
        %470 = vmatprep.subr.mxu0 0.0
        %471 = vmatpush1.msra.mxu0 0.0
        %472 = vmatprep.subr.mxu0 0.0
        %473 = vmatpush1.msra.mxu0 0.0
        %474 = vmatprep.subr.mxu0 0.0
        %475 = vmatpush1.msra.mxu0 0.0
        %476 = vmatprep.subr.mxu0 0.0
        %477 = vmatpush1.msra.mxu0 0.0
        %478 = vmatprep.subr.mxu0 0.0
        %479 = vmatpush1.msra.mxu0 0.0
        %480 = vmatprep.subr.mxu0 0.0
        %481 = vmatpush1.msra.mxu0 0.0
        %482 = vmatprep.subr.mxu0 0.0
        %483 = vmatpush1.msra.mxu0 0.0
        %484 = vmatprep.subr.mxu0 0.0
        %485 = vmatpush1.msra.mxu0 0.0
        %486 = vmatprep.mubr.f32.mxu0 0.0
        %487 = vmatmul.mubr.f32.gmra.mrb[0].mxu0 %v317
        %v488 = vpop.f32.mrb[0].mxu0
        %v489 = vadd.f32 %v421, %v488
        %v490 = vpop.f32.mrb[0].mxu0
        %491 = vmatprep.mubr.f32.mxu0 0.0
        %492 = vmatmul.mubr.f32.gmra.mrb[0].mxu0 %v320
        %v493 = vpop.f32.mrb[0].mxu0
        %v494 = vadd.f32 %v421, %v493
        %v495 = vpop.f32.mrb[0].mxu0
        %496 = vmatprep.mubr.f32.mxu0 0.0
        %497 = vmatmul.mubr.f32.gmra.mrb[0].mxu0 %v323
        %v498 = vpop.f32.mrb[0].mxu0
        %v499 = vadd.f32 %v421, %v498
        %v500 = vpop.f32.mrb[0].mxu0
        %501 = vmatprep.mubr.f32.mxu0 0.0
        %502 = vmatmul.mubr.f32.gmra.mrb[0].mxu0 %v326
        %v503 = vpop.f32.mrb[0].mxu0
        %v504 = vadd.f32 %v421, %v503
        %v505 = vpop.f32.mrb[0].mxu0
        %506 = vdwg.mxu0
        %511 = vrot.lane.b32.xlu0 %v395, 96
        %v512 = vpop.permute.xlu0 %511
        %513 = vrot.lane.b32.xlu0 %v400, 96
        %v514 = vpop.permute.xlu0 %513
        %515 = vrot.lane.b32.xlu0 %v405, 96
        %v516 = vpop.permute.xlu0 %515
        %517 = vrot.lane.b32.xlu0 %v410, 96
        %v518 = vpop.permute.xlu0 %517
        %519 = vrot.lane.b32.xlu0 %v395, 64
        %v520 = vpop.permute.xlu0 %519
        %521 = vrot.lane.b32.xlu0 %v400, 64
        %v522 = vpop.permute.xlu0 %521
        %523 = vrot.lane.b32.xlu0 %v405, 64
        %v524 = vpop.permute.xlu0 %523
        %525 = vrot.lane.b32.xlu0 %v410, 64
        %v526 = vpop.permute.xlu0 %525
        %527 = vrot.lane.b32.xlu0 %v395, 32
        %v528 = vpop.permute.xlu0 %527
        %529 = vrot.lane.b32.xlu0 %v400, 32
        %v530 = vpop.permute.xlu0 %529
        %531 = vrot.lane.b32.xlu0 %v405, 32
        %v532 = vpop.permute.xlu0 %531
        %533 = vrot.lane.b32.xlu0 %v410, 32
        %v534 = vpop.permute.xlu0 %533
        %v535 = vld [vmem:[#allocation4 + $0x110] sm:$0xff]
        %v536 = vld [vmem:[#allocation4 + $0x118] sm:$0xff]
        %v537 = vld [vmem:[#allocation4 + $0x120] sm:$0xff]
        %v538 = vld [vmem:[#allocation4 + $0x128] sm:$0xff]
        %v539 = vld [vmem:[#allocation4 + $0x130] sm:$0xff]
        %v540 = vld [vmem:[#allocation4 + $0x138] sm:$0xff]
        %v541 = vld [vmem:[#allocation4 + $0x140] sm:$0xff]
        %v542 = vld [vmem:[#allocation4 + $0x148] sm:$0xff]
        %v543 = vld [vmem:[#allocation4 + $0x150] sm:$0xff]
        %v544 = vld [vmem:[#allocation4 + $0x158] sm:$0xff]
        %v545 = vld [vmem:[#allocation4 + $0x160] sm:$0xff]
        %v546 = vld [vmem:[#allocation4 + $0x168] sm:$0xff]
        %v547 = vld [vmem:[#allocation4 + $0x170] sm:$0xff]
        %v548 = vld [vmem:[#allocation4 + $0x178] sm:$0xff]
        %v549 = vld [vmem:[#allocation4 + $0x180] sm:$0xff]
        %v550 = vld [vmem:[#allocation4 + $0x188] sm:$0xff]
        %v551 = vsel %vm315, %v395, 0
        %v553 = vsel %vm315, %v400, 0
        %v555 = vsel %vm315, %v405, 0
        %v557 = vsel %vm315, %v410, 0
        %v559 = vsel %vm315, %v512, 0
        %v561 = vsel %vm315, %v514, 0
        %v563 = vsel %vm315, %v516, 0
        %v565 = vsel %vm315, %v518, 0
        %v567 = vsel %vm315, %v520, 0
        %v569 = vsel %vm315, %v522, 0
        %v571 = vsel %vm315, %v524, 0
        %v573 = vsel %vm315, %v526, 0
        %v575 = vsel %vm315, %v528, 0
        %v577 = vsel %vm315, %v530, 0
        %v579 = vsel %vm315, %v532, 0
        %v581 = vsel %vm315, %v534, 0
        %v584 = vsel %vm315, %v489, 0
        %v587 = vsel %vm315, %v494, 0
        %v590 = vsel %vm315, %v499, 0
        %v593 = vsel %vm315, %v504, 0
        %595 = vmatprep.subr.mxu0 0.0
        %596 = vmatpush1.xpose.msra.mxu0 %v584
        %597 = vmatprep.subr.mxu0 0.0
        %598 = vmatpush1.xpose.msra.mxu0 %v587
        %599 = vmatprep.subr.mxu0 0.0
        %600 = vmatpush1.xpose.msra.mxu0 %v590
        %601 = vmatprep.subr.mxu0 0.0
        %602 = vmatpush1.xpose.msra.mxu0 %v593
        %603 = vmatprep.subr.mxu0 0.0
        %604 = vmatpush1.xpose.msra.mxu0 0.0
        %605 = vmatprep.subr.mxu0 0.0
        %606 = vmatpush1.xpose.msra.mxu0 0.0
        %607 = vmatprep.subr.mxu0 0.0
        %608 = vmatpush1.xpose.msra.mxu0 0.0
        %609 = vmatprep.subr.mxu0 0.0
        %610 = vmatpush1.xpose.msra.mxu0 0.0
        %611 = vmatprep.subr.mxu0 0.0
        %612 = vmatpush1.xpose.msra.mxu0 0.0
        %613 = vmatprep.subr.mxu0 0.0
        %614 = vmatpush1.xpose.msra.mxu0 0.0
        %615 = vmatprep.subr.mxu0 0.0
        %616 = vmatpush1.xpose.msra.mxu0 0.0
        %617 = vmatprep.subr.mxu0 0.0
        %618 = vmatpush1.xpose.msra.mxu0 0.0
        %619 = vmatprep.subr.mxu0 0.0
        %620 = vmatpush1.xpose.msra.mxu0 0.0
        %621 = vmatprep.subr.mxu0 0.0
        %622 = vmatpush1.xpose.msra.mxu0 0.0
        %623 = vmatprep.subr.mxu0 0.0
        %624 = vmatpush1.xpose.msra.mxu0 0.0
        %625 = vmatprep.subr.mxu0 0.0
        %626 = vmatpush1.xpose.msra.mxu0 0.0
        %627 = vmatprep.subr.mxu0 0.0
        %628 = vmatpush1.xpose.msra.mxu0 0.0
        %629 = vmatprep.subr.mxu0 0.0
        %630 = vmatpush1.xpose.msra.mxu0 0.0
        %631 = vmatprep.subr.mxu0 0.0
        %632 = vmatpush1.xpose.msra.mxu0 0.0
        %633 = vmatprep.subr.mxu0 0.0
        %634 = vmatpush1.xpose.msra.mxu0 0.0
        %635 = vmatprep.subr.mxu0 0.0
        %636 = vmatpush1.xpose.msra.mxu0 0.0
        %637 = vmatprep.subr.mxu0 0.0
        %638 = vmatpush1.xpose.msra.mxu0 0.0
        %639 = vmatprep.subr.mxu0 0.0
        %640 = vmatpush1.xpose.msra.mxu0 0.0
        %641 = vmatprep.subr.mxu0 0.0
        %642 = vmatpush1.xpose.msra.mxu0 0.0
        %643 = vmatprep.subr.mxu0 0.0
        %644 = vmatpush1.xpose.msra.mxu0 0.0
        %645 = vmatprep.subr.mxu0 0.0
        %646 = vmatpush1.xpose.msra.mxu0 0.0
        %647 = vmatprep.subr.mxu0 0.0
        %648 = vmatpush1.xpose.msra.mxu0 0.0
        %649 = vmatprep.subr.mxu0 0.0
        %650 = vmatpush1.xpose.msra.mxu0 0.0
        %651 = vmatprep.subr.mxu0 0.0
        %652 = vmatpush1.xpose.msra.mxu0 0.0
        %653 = vmatprep.subr.mxu0 0.0
        %654 = vmatpush1.xpose.msra.mxu0 0.0
        %655 = vmatprep.subr.mxu0 0.0
        %656 = vmatpush1.xpose.msra.mxu0 0.0
        %657 = vmatprep.subr.mxu0 0.0
        %658 = vmatpush1.xpose.msra.mxu0 0.0
        %659 = vmatprep.mubr.f32.mxu0 0.0
        %660 = vmatmul.mubr.f32.gmra.mrb[0].mxu0 %v551
        %v661 = vpop.f32.mrb[0].mxu0
        %v662 = vadd.f32 %v535, %v661
        %v663 = vpop.f32.mrb[0].mxu0
        %664 = vmatprep.mubr.f32.mxu0 0.0
        %665 = vmatmul.mubr.f32.gmra.mrb[0].mxu0 %v553
        %v666 = vpop.f32.mrb[0].mxu0
        %v667 = vadd.f32 %v536, %v666
        %v668 = vpop.f32.mrb[0].mxu0
        %669 = vmatprep.mubr.f32.mxu0 0.0
        %670 = vmatmul.mubr.f32.gmra.mrb[0].mxu0 %v555
        %v671 = vpop.f32.mrb[0].mxu0
        %v672 = vadd.f32 %v537, %v671
        %v673 = vpop.f32.mrb[0].mxu0
        %674 = vmatprep.mubr.f32.mxu0 0.0
        %675 = vmatmul.mubr.f32.gmra.mrb[0].mxu0 %v557
        %v676 = vpop.f32.mrb[0].mxu0
        %v677 = vadd.f32 %v538, %v676
        %v678 = vpop.f32.mrb[0].mxu0
        %679 = vmatprep.mubr.f32.mxu0 0.0
        %680 = vmatmul.mubr.f32.gmra.mrb[0].mxu0 %v559
        %v681 = vpop.f32.mrb[0].mxu0
        %v682 = vadd.f32 %v539, %v681
        %v683 = vpop.f32.mrb[0].mxu0
        %684 = vmatprep.mubr.f32.mxu0 0.0
        %685 = vmatmul.mubr.f32.gmra.mrb[0].mxu0 %v561
        %v686 = vpop.f32.mrb[0].mxu0
        %v687 = vadd.f32 %v540, %v686
        %v688 = vpop.f32.mrb[0].mxu0
        %689 = vmatprep.mubr.f32.mxu0 0.0
        %690 = vmatmul.mubr.f32.gmra.mrb[0].mxu0 %v563
        %v691 = vpop.f32.mrb[0].mxu0
        %v692 = vadd.f32 %v541, %v691
        %v693 = vpop.f32.mrb[0].mxu0
        %694 = vmatprep.mubr.f32.mxu0 0.0
        %695 = vmatmul.mubr.f32.gmra.mrb[0].mxu0 %v565
        %v696 = vpop.f32.mrb[0].mxu0
        %v697 = vadd.f32 %v542, %v696
        %v698 = vpop.f32.mrb[0].mxu0
        %699 = vmatprep.mubr.f32.mxu0 0.0
        %700 = vmatmul.mubr.f32.gmra.mrb[0].mxu0 %v567
        %v701 = vpop.f32.mrb[0].mxu0
        %v702 = vadd.f32 %v543, %v701
        %v703 = vpop.f32.mrb[0].mxu0
        %704 = vmatprep.mubr.f32.mxu0 0.0
        %705 = vmatmul.mubr.f32.gmra.mrb[0].mxu0 %v569
        %v706 = vpop.f32.mrb[0].mxu0
        %v707 = vadd.f32 %v544, %v706
        %v708 = vpop.f32.mrb[0].mxu0
        %709 = vmatprep.mubr.f32.mxu0 0.0
        %710 = vmatmul.mubr.f32.gmra.mrb[0].mxu0 %v571
        %v711 = vpop.f32.mrb[0].mxu0
        %v712 = vadd.f32 %v545, %v711
        %v713 = vpop.f32.mrb[0].mxu0
        %714 = vmatprep.mubr.f32.mxu0 0.0
        %715 = vmatmul.mubr.f32.gmra.mrb[0].mxu0 %v573
        %v716 = vpop.f32.mrb[0].mxu0
        %v717 = vadd.f32 %v546, %v716
        %v718 = vpop.f32.mrb[0].mxu0
        %719 = vmatprep.mubr.f32.mxu0 0.0
        %720 = vmatmul.mubr.f32.gmra.mrb[0].mxu0 %v575
        %v721 = vpop.f32.mrb[0].mxu0
        %v722 = vadd.f32 %v547, %v721
        %v723 = vpop.f32.mrb[0].mxu0
        %724 = vmatprep.mubr.f32.mxu0 0.0
        %725 = vmatmul.mubr.f32.gmra.mrb[0].mxu0 %v577
        %v726 = vpop.f32.mrb[0].mxu0
        %v727 = vadd.f32 %v548, %v726
        %v728 = vpop.f32.mrb[0].mxu0
        %729 = vmatprep.mubr.f32.mxu0 0.0
        %730 = vmatmul.mubr.f32.gmra.mrb[0].mxu0 %v579
        %v731 = vpop.f32.mrb[0].mxu0
        %v732 = vadd.f32 %v549, %v731
        %v733 = vpop.f32.mrb[0].mxu0
        %734 = vmatprep.mubr.f32.mxu0 0.0
        %735 = vmatmul.mubr.f32.gmra.mrb[0].mxu0 %v581
        %v736 = vpop.f32.mrb[0].mxu0
        %v737 = vadd.f32 %v550, %v736
        %v738 = vpop.f32.mrb[0].mxu0
        %739 = vdwg.mxu0
        %v740 = vsel %vm315, %v662, -inf
        %741 = vmax.xlane.f32.xlu0 %v740
        %v742 = vpop.xlane.xlu0 %741
        %v743 = vsel %vm315, %v667, -inf
        %744 = vmax.xlane.f32.xlu0 %v743
        %v745 = vpop.xlane.xlu0 %744
        %v746 = vsel %vm315, %v672, -inf
        %747 = vmax.xlane.f32.xlu0 %v746
        %v748 = vpop.xlane.xlu0 %747
        %v749 = vsel %vm315, %v677, -inf
        %750 = vmax.xlane.f32.xlu0 %v749
        %v751 = vpop.xlane.xlu0 %750
        %v752 = vsel %vm315, %v682, -inf
        %753 = vmax.xlane.f32.xlu0 %v752
        %v754 = vpop.xlane.xlu0 %753
        %v755 = vsel %vm315, %v687, -inf
        %756 = vmax.xlane.f32.xlu0 %v755
        %v757 = vpop.xlane.xlu0 %756
        %v758 = vsel %vm315, %v692, -inf
        %759 = vmax.xlane.f32.xlu0 %v758
        %v760 = vpop.xlane.xlu0 %759
        %v761 = vsel %vm315, %v697, -inf
        %762 = vmax.xlane.f32.xlu0 %v761
        %v763 = vpop.xlane.xlu0 %762
        %v764 = vsel %vm315, %v702, -inf
        %765 = vmax.xlane.f32.xlu0 %v764
        %v766 = vpop.xlane.xlu0 %765
        %v767 = vsel %vm315, %v707, -inf
        %768 = vmax.xlane.f32.xlu0 %v767
        %v769 = vpop.xlane.xlu0 %768
        %v770 = vsel %vm315, %v712, -inf
        %771 = vmax.xlane.f32.xlu0 %v770
        %v772 = vpop.xlane.xlu0 %771
        %v773 = vsel %vm315, %v717, -inf
        %774 = vmax.xlane.f32.xlu0 %v773
        %v775 = vpop.xlane.xlu0 %774
        %v776 = vsel %vm315, %v722, -inf
        %777 = vmax.xlane.f32.xlu0 %v776
        %v778 = vpop.xlane.xlu0 %777
        %v779 = vsel %vm315, %v727, -inf
        %780 = vmax.xlane.f32.xlu0 %v779
        %v781 = vpop.xlane.xlu0 %780
        %v782 = vsel %vm315, %v732, -inf
        %783 = vmax.xlane.f32.xlu0 %v782
        %v784 = vpop.xlane.xlu0 %783
        %v785 = vsel %vm315, %v737, -inf
        %786 = vmax.xlane.f32.xlu0 %v785
        %v787 = vpop.xlane.xlu0 %786
        %v788 = vsub.f32 %v662, %v742
        %v789 = vsub.f32 %v667, %v745
        %v790 = vsub.f32 %v672, %v748
        %v791 = vsub.f32 %v677, %v751
        %v792 = vsub.f32 %v682, %v754
        %v793 = vsub.f32 %v687, %v757
        %v794 = vsub.f32 %v692, %v760
        %v795 = vsub.f32 %v697, %v763
        %v796 = vsub.f32 %v702, %v766
        %v797 = vsub.f32 %v707, %v769
        %v798 = vsub.f32 %v712, %v772
        %v799 = vsub.f32 %v717, %v775
        %v800 = vsub.f32 %v722, %v778
        %v801 = vsub.f32 %v727, %v781
        %v802 = vsub.f32 %v732, %v784
        %v803 = vsub.f32 %v737, %v787
        %v804 = vmul.f32 %v788, 1.442695
        %v805 = vpow.pop %v804
        %v806 = vmul.f32 %v789, 1.442695
        %v807 = vpow.pop %v806
        %v808 = vmul.f32 %v790, 1.442695
        %v809 = vpow.pop %v808
        %v810 = vmul.f32 %v791, 1.442695
        %v811 = vpow.pop %v810
        %v812 = vmul.f32 %v792, 1.442695
        %v813 = vpow.pop %v812
        %v814 = vmul.f32 %v793, 1.442695
        %v815 = vpow.pop %v814
        %v816 = vmul.f32 %v794, 1.442695
        %v817 = vpow.pop %v816
        %v818 = vmul.f32 %v795, 1.442695
        %v819 = vpow.pop %v818
        %v820 = vmul.f32 %v796, 1.442695
        %v821 = vpow.pop %v820
        %v822 = vmul.f32 %v797, 1.442695
        %v823 = vpow.pop %v822
        %v824 = vmul.f32 %v798, 1.442695
        %v825 = vpow.pop %v824
        %v826 = vmul.f32 %v799, 1.442695
        %v827 = vpow.pop %v826
        %v828 = vmul.f32 %v800, 1.442695
        %v829 = vpow.pop %v828
        %v830 = vmul.f32 %v801, 1.442695
        %v831 = vpow.pop %v830
        %v832 = vmul.f32 %v802, 1.442695
        %v833 = vpow.pop %v832
        %v834 = vmul.f32 %v803, 1.442695
        %v835 = vpow.pop %v834
        %v836 = vsel %vm315, %v805, 0.0
        %837 = vadd.xlane.f32.xlu0 %v836
        %v838 = vpop.xlane.xlu0 %837
        %v839 = vsel %vm315, %v807, 0.0
        %840 = vadd.xlane.f32.xlu0 %v839
        %v841 = vpop.xlane.xlu0 %840
        %v842 = vsel %vm315, %v809, 0.0
        %843 = vadd.xlane.f32.xlu0 %v842
        %v844 = vpop.xlane.xlu0 %843
        %v845 = vsel %vm315, %v811, 0.0
        %846 = vadd.xlane.f32.xlu0 %v845
        %v847 = vpop.xlane.xlu0 %846
        %v848 = vsel %vm315, %v813, 0.0
        %849 = vadd.xlane.f32.xlu0 %v848
        %v850 = vpop.xlane.xlu0 %849
        %v851 = vsel %vm315, %v815, 0.0
        %852 = vadd.xlane.f32.xlu0 %v851
        %v853 = vpop.xlane.xlu0 %852
        %v854 = vsel %vm315, %v817, 0.0
        %855 = vadd.xlane.f32.xlu0 %v854
        %v856 = vpop.xlane.xlu0 %855
        %v857 = vsel %vm315, %v819, 0.0
        %858 = vadd.xlane.f32.xlu0 %v857
        %v859 = vpop.xlane.xlu0 %858
        %v860 = vsel %vm315, %v821, 0.0
        %861 = vadd.xlane.f32.xlu0 %v860
        %v862 = vpop.xlane.xlu0 %861
        %v863 = vsel %vm315, %v823, 0.0
        %864 = vadd.xlane.f32.xlu0 %v863
        %v865 = vpop.xlane.xlu0 %864
        %v866 = vsel %vm315, %v825, 0.0
        %867 = vadd.xlane.f32.xlu0 %v866
        %v868 = vpop.xlane.xlu0 %867
        %v869 = vsel %vm315, %v827, 0.0
        %870 = vadd.xlane.f32.xlu0 %v869
        %v871 = vpop.xlane.xlu0 %870
        %v872 = vsel %vm315, %v829, 0.0
        %873 = vadd.xlane.f32.xlu0 %v872
        %v874 = vpop.xlane.xlu0 %873
        %v875 = vsel %vm315, %v831, 0.0
        %876 = vadd.xlane.f32.xlu0 %v875
        %v877 = vpop.xlane.xlu0 %876
        %v878 = vsel %vm315, %v833, 0.0
        %879 = vadd.xlane.f32.xlu0 %v878
        %v880 = vpop.xlane.xlu0 %879
        %v881 = vsel %vm315, %v835, 0.0
        %882 = vadd.xlane.f32.xlu0 %v881
        %v883 = vpop.xlane.xlu0 %882
        %v884 = vrcp.pop %v838
        %v885 = vrcp.pop %v841
        %v886 = vrcp.pop %v844
        %v887 = vrcp.pop %v847
        %v888 = vrcp.pop %v850
        %v889 = vrcp.pop %v853
        %v890 = vrcp.pop %v856
        %v891 = vrcp.pop %v859
        %v892 = vrcp.pop %v862
        %v893 = vrcp.pop %v865
        %v894 = vrcp.pop %v868
        %v895 = vrcp.pop %v871
        %v896 = vrcp.pop %v874
        %v897 = vrcp.pop %v877
        %v898 = vrcp.pop %v880
        %v899 = vrcp.pop %v883
        %v900 = vmul.f32 %v805, %v884
        %v901 = vmul.f32 %v807, %v885
        %v902 = vmul.f32 %v809, %v886
        %v903 = vmul.f32 %v811, %v887
        %v904 = vmul.f32 %v813, %v888
        %v905 = vmul.f32 %v815, %v889
        %v906 = vmul.f32 %v817, %v890
        %v907 = vmul.f32 %v819, %v891
        %v908 = vmul.f32 %v821, %v892
        %v909 = vmul.f32 %v823, %v893
        %v910 = vmul.f32 %v825, %v894
        %v911 = vmul.f32 %v827, %v895
        %v912 = vmul.f32 %v829, %v896
        %v913 = vmul.f32 %v831, %v897
        %v914 = vmul.f32 %v833, %v898
        %v915 = vmul.f32 %v835, %v899
        %916 = vrot.lane.b32.xlu0 %v489, 96
        %v917 = vpop.permute.xlu0 %916
        %918 = vrot.lane.b32.xlu0 %v494, 96
        %v919 = vpop.permute.xlu0 %918
        %920 = vrot.lane.b32.xlu0 %v499, 96
        %v921 = vpop.permute.xlu0 %920
        %922 = vrot.lane.b32.xlu0 %v504, 96
        %v923 = vpop.permute.xlu0 %922
        %v929 = vsel %vm315, %v900, 0
        %v932 = vsel %vm315, %v901, 0
        %v935 = vsel %vm315, %v902, 0
        %v938 = vsel %vm315, %v903, 0
        %v941 = vsel %vm315, %v904, 0
        %v944 = vsel %vm315, %v905, 0
        %v947 = vsel %vm315, %v906, 0
        %v950 = vsel %vm315, %v907, 0
        %v953 = vsel %vm315, %v908, 0
        %v956 = vsel %vm315, %v909, 0
        %v959 = vsel %vm315, %v910, 0
        %v962 = vsel %vm315, %v911, 0
        %v965 = vsel %vm315, %v912, 0
        %v968 = vsel %vm315, %v913, 0
        %v971 = vsel %vm315, %v914, 0
        %v974 = vsel %vm315, %v915, 0
        %976 = vmatprep.subr.mxu0 0.0
        %977 = vmatpush1.msra.mxu0 %v917
        %978 = vmatprep.subr.mxu0 0.0
        %979 = vmatpush1.msra.mxu0 %v919
        %980 = vmatprep.subr.mxu0 0.0
        %981 = vmatpush1.msra.mxu0 %v921
        %982 = vmatprep.subr.mxu0 0.0
        %983 = vmatpush1.msra.mxu0 %v923
        %984 = vmatprep.subr.mxu0 0.0
        %985 = vmatpush1.msra.mxu0 0.0
        %986 = vmatprep.subr.mxu0 0.0
        %987 = vmatpush1.msra.mxu0 0.0
        %988 = vmatprep.subr.mxu0 0.0
        %989 = vmatpush1.msra.mxu0 0.0
        %990 = vmatprep.subr.mxu0 0.0
        %991 = vmatpush1.msra.mxu0 0.0
        %992 = vmatprep.subr.mxu0 0.0
        %993 = vmatpush1.msra.mxu0 0.0
        %994 = vmatprep.subr.mxu0 0.0
        %995 = vmatpush1.msra.mxu0 0.0
        %996 = vmatprep.subr.mxu0 0.0
        %997 = vmatpush1.msra.mxu0 0.0
        %998 = vmatprep.subr.mxu0 0.0
        %999 = vmatpush1.msra.mxu0 0.0
        %1000 = vmatprep.subr.mxu0 0.0
        %1001 = vmatpush1.msra.mxu0 0.0
        %1002 = vmatprep.subr.mxu0 0.0
        %1003 = vmatpush1.msra.mxu0 0.0
        %1004 = vmatprep.subr.mxu0 0.0
        %1005 = vmatpush1.msra.mxu0 0.0
        %1006 = vmatprep.subr.mxu0 0.0
        %1007 = vmatpush1.msra.mxu0 0.0
        %1008 = vmatprep.subr.mxu0 0.0
        %1009 = vmatpush1.msra.mxu0 0.0
        %1010 = vmatprep.subr.mxu0 0.0
        %1011 = vmatpush1.msra.mxu0 0.0
        %1012 = vmatprep.subr.mxu0 0.0
        %1013 = vmatpush1.msra.mxu0 0.0
        %1014 = vmatprep.subr.mxu0 0.0
        %1015 = vmatpush1.msra.mxu0 0.0
        %1016 = vmatprep.subr.mxu0 0.0
        %1017 = vmatpush1.msra.mxu0 0.0
        %1018 = vmatprep.subr.mxu0 0.0
        %1019 = vmatpush1.msra.mxu0 0.0
        %1020 = vmatprep.subr.mxu0 0.0
        %1021 = vmatpush1.msra.mxu0 0.0
        %1022 = vmatprep.subr.mxu0 0.0
        %1023 = vmatpush1.msra.mxu0 0.0
        %1024 = vmatprep.subr.mxu0 0.0
        %1025 = vmatpush1.msra.mxu0 0.0
        %1026 = vmatprep.subr.mxu0 0.0
        %1027 = vmatpush1.msra.mxu0 0.0
        %1028 = vmatprep.subr.mxu0 0.0
        %1029 = vmatpush1.msra.mxu0 0.0
        %1030 = vmatprep.subr.mxu0 0.0
        %1031 = vmatpush1.msra.mxu0 0.0
        %1032 = vmatprep.subr.mxu0 0.0
        %1033 = vmatpush1.msra.mxu0 0.0
        %1034 = vmatprep.subr.mxu0 0.0
        %1035 = vmatpush1.msra.mxu0 0.0
        %1036 = vmatprep.subr.mxu0 0.0
        %1037 = vmatpush1.msra.mxu0 0.0
        %1038 = vmatprep.subr.mxu0 0.0
        %1039 = vmatpush1.msra.mxu0 0.0
        %1040 = vmatprep.mubr.f32.mxu0 0.0
        %1041 = vmatmul.mubr.f32.gmra.mrb[0].mxu0 %v929
        %v1042 = vpop.f32.mrb[0].mxu0
        %v1043 = vadd.f32 0.0, %v1042
        %v1044 = vpop.f32.mrb[0].mxu0
        %1045 = vmatprep.mubr.f32.mxu0 0.0
        %1046 = vmatmul.mubr.f32.gmra.mrb[0].mxu0 %v932
        %v1047 = vpop.f32.mrb[0].mxu0
        %v1048 = vadd.f32 0.0, %v1047
        %v1049 = vpop.f32.mrb[0].mxu0
        %1050 = vmatprep.mubr.f32.mxu0 0.0
        %1051 = vmatmul.mubr.f32.gmra.mrb[0].mxu0 %v935
        %v1052 = vpop.f32.mrb[0].mxu0
        %v1053 = vadd.f32 0.0, %v1052
        %v1054 = vpop.f32.mrb[0].mxu0
        %1055 = vmatprep.mubr.f32.mxu0 0.0
        %1056 = vmatmul.mubr.f32.gmra.mrb[0].mxu0 %v938
        %v1057 = vpop.f32.mrb[0].mxu0
        %v1058 = vadd.f32 0.0, %v1057
        %v1059 = vpop.f32.mrb[0].mxu0
        %1060 = vmatprep.mubr.f32.mxu0 0.0
        %1061 = vmatmul.mubr.f32.gmra.mrb[0].mxu0 %v941
        %v1062 = vpop.f32.mrb[0].mxu0
        %v1063 = vadd.f32 0.0, %v1062
        %v1064 = vpop.f32.mrb[0].mxu0
        %1065 = vmatprep.mubr.f32.mxu0 0.0
        %1066 = vmatmul.mubr.f32.gmra.mrb[0].mxu0 %v944
        %v1067 = vpop.f32.mrb[0].mxu0
        %v1068 = vadd.f32 0.0, %v1067
        %v1069 = vpop.f32.mrb[0].mxu0
        %1070 = vmatprep.mubr.f32.mxu0 0.0
        %1071 = vmatmul.mubr.f32.gmra.mrb[0].mxu0 %v947
        %v1072 = vpop.f32.mrb[0].mxu0
        %v1073 = vadd.f32 0.0, %v1072
        %v1074 = vpop.f32.mrb[0].mxu0
        %1075 = vmatprep.mubr.f32.mxu0 0.0
        %1076 = vmatmul.mubr.f32.gmra.mrb[0].mxu0 %v950
        %v1077 = vpop.f32.mrb[0].mxu0
        %v1078 = vadd.f32 0.0, %v1077
        %v1079 = vpop.f32.mrb[0].mxu0
        %1080 = vmatprep.mubr.f32.mxu0 0.0
        %1081 = vmatmul.mubr.f32.gmra.mrb[0].mxu0 %v953
        %v1082 = vpop.f32.mrb[0].mxu0
        %v1083 = vadd.f32 0.0, %v1082
        %v1084 = vpop.f32.mrb[0].mxu0
        %1085 = vmatprep.mubr.f32.mxu0 0.0
        %1086 = vmatmul.mubr.f32.gmra.mrb[0].mxu0 %v956
        %v1087 = vpop.f32.mrb[0].mxu0
        %v1088 = vadd.f32 0.0, %v1087
        %v1089 = vpop.f32.mrb[0].mxu0
        %1090 = vmatprep.mubr.f32.mxu0 0.0
        %1091 = vmatmul.mubr.f32.gmra.mrb[0].mxu0 %v959
        %v1092 = vpop.f32.mrb[0].mxu0
        %v1093 = vadd.f32 0.0, %v1092
        %v1094 = vpop.f32.mrb[0].mxu0
        %1095 = vmatprep.mubr.f32.mxu0 0.0
        %1096 = vmatmul.mubr.f32.gmra.mrb[0].mxu0 %v962
        %v1097 = vpop.f32.mrb[0].mxu0
        %v1098 = vadd.f32 0.0, %v1097
        %v1099 = vpop.f32.mrb[0].mxu0
        %1100 = vmatprep.mubr.f32.mxu0 0.0
        %1101 = vmatmul.mubr.f32.gmra.mrb[0].mxu0 %v965
        %v1102 = vpop.f32.mrb[0].mxu0
        %v1103 = vadd.f32 0.0, %v1102
        %v1104 = vpop.f32.mrb[0].mxu0
        %1105 = vmatprep.mubr.f32.mxu0 0.0
        %1106 = vmatmul.mubr.f32.gmra.mrb[0].mxu0 %v968
        %v1107 = vpop.f32.mrb[0].mxu0
        %v1108 = vadd.f32 0.0, %v1107
        %v1109 = vpop.f32.mrb[0].mxu0
        %1110 = vmatprep.mubr.f32.mxu0 0.0
        %1111 = vmatmul.mubr.f32.gmra.mrb[0].mxu0 %v971
        %v1112 = vpop.f32.mrb[0].mxu0
        %v1113 = vadd.f32 0.0, %v1112
        %v1114 = vpop.f32.mrb[0].mxu0
        %1115 = vmatprep.mubr.f32.mxu0 0.0
        %1116 = vmatmul.mubr.f32.gmra.mrb[0].mxu0 %v974
        %v1117 = vpop.f32.mrb[0].mxu0
        %v1118 = vadd.f32 0.0, %v1117
        %v1119 = vpop.f32.mrb[0].mxu0
        %1120 = vdwg.mxu0
        %v1121 = vld [vmem:[#allocation4 + $0x194] sm:$0xf]
        %v1122 = vlaneseq
        %v1123 = vshrl.u32 %v1122, 7
        %v1124 = vsub.s32 0, %v1123
        %v1125 = vrot.slane %v1121, %v1124
        %v1126 = vmul.f32 %v1125, %v1043
        %v1127 = vmul.f32 %v1125, %v1048
        %v1128 = vmul.f32 %v1125, %v1053
        %v1129 = vmul.f32 %v1125, %v1058
        %v1130 = vlaneseq
        %v1131 = vshrl.u32 %v1130, 7
        %v1132 = vsub.s32 1, %v1131
        %v1133 = vrot.slane %v1121, %v1132
        %v1134 = vmul.f32 %v1133, %v1063
        %v1135 = vmul.f32 %v1133, %v1068
        %v1136 = vmul.f32 %v1133, %v1073
        %v1137 = vmul.f32 %v1133, %v1078
        %v1138 = vadd.f32 %v1126, %v1134
        %v1139 = vadd.f32 %v1127, %v1135
        %v1140 = vadd.f32 %v1128, %v1136
        %v1141 = vadd.f32 %v1129, %v1137
        %v1142 = vlaneseq
        %v1143 = vshrl.u32 %v1142, 7
        %v1144 = vsub.s32 2, %v1143
        %v1145 = vrot.slane %v1121, %v1144
        %v1146 = vmul.f32 %v1145, %v1083
        %v1147 = vmul.f32 %v1145, %v1088
        %v1148 = vmul.f32 %v1145, %v1093
        %v1149 = vmul.f32 %v1145, %v1098
        %v1150 = vadd.f32 %v1138, %v1146
        %v1151 = vadd.f32 %v1139, %v1147
        %v1152 = vadd.f32 %v1140, %v1148
        %v1153 = vadd.f32 %v1141, %v1149
        %v1154 = vlaneseq
        %v1155 = vshrl.u32 %v1154, 7
        %v1156 = vsub.s32 3, %v1155
        %v1157 = vrot.slane %v1121, %v1156
        %v1158 = vmul.f32 %v1157, %v1103
        %v1159 = vmul.f32 %v1157, %v1108
        %v1160 = vmul.f32 %v1157, %v1113
        %v1161 = vmul.f32 %v1157, %v1118
        %v1162 = vadd.f32 %v1150, %v1158
        %v1163 = vadd.f32 %v1151, %v1159
        %v1164 = vadd.f32 %v1152, %v1160
        %v1165 = vadd.f32 %v1153, %v1161
        %v1166 = vld [vmem:[#allocation4 + $0x50] sm:$0xff]
        %v1167 = vld [vmem:[#allocation4 + $0x58] sm:$0xff]
        %v1168 = vld [vmem:[#allocation4 + $0x60] sm:$0xff]
        %v1169 = vld [vmem:[#allocation4 + $0x68] sm:$0xff]
        %v1170 = vld [vmem:[#allocation4 + $0x19b] sm:$0x1]
        %v1171 = vlaneseq
        %v1172 = vshrl.u32 %v1171, 7
        %v1173 = vsub.s32 0, %v1172
        %v1174 = vrot.slane %v1170, %v1173
        %v1176 = vsel %vm315, %v1162, 0
        %v1179 = vsel %vm315, %v1163, 0
        %v1182 = vsel %vm315, %v1164, 0
        %v1185 = vsel %vm315, %v1165, 0
        %1187 = vmatprep.subr.mxu0 0.0
        %1188 = vmatpush1.msra.mxu0 %v1166
        %1189 = vmatprep.subr.mxu0 0.0
        %1190 = vmatpush1.msra.mxu0 %v1167
        %1191 = vmatprep.subr.mxu0 0.0
        %1192 = vmatpush1.msra.mxu0 %v1168
        %1193 = vmatprep.subr.mxu0 0.0
        %1194 = vmatpush1.msra.mxu0 %v1169
        %1195 = vmatprep.subr.mxu0 0.0
        %1196 = vmatpush1.msra.mxu0 0.0
        %1197 = vmatprep.subr.mxu0 0.0
        %1198 = vmatpush1.msra.mxu0 0.0
        %1199 = vmatprep.subr.mxu0 0.0
        %1200 = vmatpush1.msra.mxu0 0.0
        %1201 = vmatprep.subr.mxu0 0.0
        %1202 = vmatpush1.msra.mxu0 0.0
        %1203 = vmatprep.subr.mxu0 0.0
        %1204 = vmatpush1.msra.mxu0 0.0
        %1205 = vmatprep.subr.mxu0 0.0
        %1206 = vmatpush1.msra.mxu0 0.0
        %1207 = vmatprep.subr.mxu0 0.0
        %1208 = vmatpush1.msra.mxu0 0.0
        %1209 = vmatprep.subr.mxu0 0.0
        %1210 = vmatpush1.msra.mxu0 0.0
        %1211 = vmatprep.subr.mxu0 0.0
        %1212 = vmatpush1.msra.mxu0 0.0
        %1213 = vmatprep.subr.mxu0 0.0
        %1214 = vmatpush1.msra.mxu0 0.0
        %1215 = vmatprep.subr.mxu0 0.0
        %1216 = vmatpush1.msra.mxu0 0.0
        %1217 = vmatprep.subr.mxu0 0.0
        %1218 = vmatpush1.msra.mxu0 0.0
        %1219 = vmatprep.subr.mxu0 0.0
        %1220 = vmatpush1.msra.mxu0 0.0
        %1221 = vmatprep.subr.mxu0 0.0
        %1222 = vmatpush1.msra.mxu0 0.0
        %1223 = vmatprep.subr.mxu0 0.0
        %1224 = vmatpush1.msra.mxu0 0.0
        %1225 = vmatprep.subr.mxu0 0.0
        %1226 = vmatpush1.msra.mxu0 0.0
        %1227 = vmatprep.subr.mxu0 0.0
        %1228 = vmatpush1.msra.mxu0 0.0
        %1229 = vmatprep.subr.mxu0 0.0
        %1230 = vmatpush1.msra.mxu0 0.0
        %1231 = vmatprep.subr.mxu0 0.0
        %1232 = vmatpush1.msra.mxu0 0.0
        %1233 = vmatprep.subr.mxu0 0.0
        %1234 = vmatpush1.msra.mxu0 0.0
        %1235 = vmatprep.subr.mxu0 0.0
        %1236 = vmatpush1.msra.mxu0 0.0
        %1237 = vmatprep.subr.mxu0 0.0
        %1238 = vmatpush1.msra.mxu0 0.0
        %1239 = vmatprep.subr.mxu0 0.0
        %1240 = vmatpush1.msra.mxu0 0.0
        %1241 = vmatprep.subr.mxu0 0.0
        %1242 = vmatpush1.msra.mxu0 0.0
        %1243 = vmatprep.subr.mxu0 0.0
        %1244 = vmatpush1.msra.mxu0 0.0
        %1245 = vmatprep.subr.mxu0 0.0
        %1246 = vmatpush1.msra.mxu0 0.0
        %1247 = vmatprep.subr.mxu0 0.0
        %1248 = vmatpush1.msra.mxu0 0.0
        %1249 = vmatprep.subr.mxu0 0.0
        %1250 = vmatpush1.msra.mxu0 0.0
        %1251 = vmatprep.mubr.f32.mxu0 0.0
        %1252 = vmatmul.mubr.f32.gmra.mrb[0].mxu0 %v1176
        %v1253 = vpop.f32.mrb[0].mxu0
        %v1254 = vadd.f32 %v1174, %v1253
        %v1255 = vpop.f32.mrb[0].mxu0
        %1256 = vmatprep.mubr.f32.mxu0 0.0
        %1257 = vmatmul.mubr.f32.gmra.mrb[0].mxu0 %v1179
        %v1258 = vpop.f32.mrb[0].mxu0
        %v1259 = vadd.f32 %v1174, %v1258
        %v1260 = vpop.f32.mrb[0].mxu0
        %1261 = vmatprep.mubr.f32.mxu0 0.0
        %1262 = vmatmul.mubr.f32.gmra.mrb[0].mxu0 %v1182
        %v1263 = vpop.f32.mrb[0].mxu0
        %v1264 = vadd.f32 %v1174, %v1263
        %v1265 = vpop.f32.mrb[0].mxu0
        %1266 = vmatprep.mubr.f32.mxu0 0.0
        %1267 = vmatmul.mubr.f32.gmra.mrb[0].mxu0 %v1185
        %v1268 = vpop.f32.mrb[0].mxu0
        %v1269 = vadd.f32 %v1174, %v1268
        %v1270 = vpop.f32.mrb[0].mxu0
        %1271 = vdwg.mxu0
        %v1272 = vld [vmem:[#allocation4 + $0x70] sm:$0xff]
        %v1273 = vld [vmem:[#allocation4 + $0x78] sm:$0xff]
        %v1274 = vld [vmem:[#allocation4 + $0x80] sm:$0xff]
        %v1275 = vld [vmem:[#allocation4 + $0x88] sm:$0xff]
        %v1276 = vld [vmem:[#allocation4 + $0x19c] sm:$0x1]
        %v1277 = vlaneseq
        %v1278 = vshrl.u32 %v1277, 7
        %v1279 = vsub.s32 0, %v1278
        %v1280 = vrot.slane %v1276, %v1279
        %v1282 = vsel %vm315, %v1254, 0
        %v1285 = vsel %vm315, %v1259, 0
        %v1288 = vsel %vm315, %v1264, 0
        %v1291 = vsel %vm315, %v1269, 0
        %1293 = vmatprep.subr.mxu0 0.0
        %1294 = vmatpush1.msra.mxu0 %v1272
        %1295 = vmatprep.subr.mxu0 0.0
        %1296 = vmatpush1.msra.mxu0 %v1273
        %1297 = vmatprep.subr.mxu0 0.0
        %1298 = vmatpush1.msra.mxu0 %v1274
        %1299 = vmatprep.subr.mxu0 0.0
        %1300 = vmatpush1.msra.mxu0 %v1275
        %1301 = vmatprep.subr.mxu0 0.0
        %1302 = vmatpush1.msra.mxu0 0.0
        %1303 = vmatprep.subr.mxu0 0.0
        %1304 = vmatpush1.msra.mxu0 0.0
        %1305 = vmatprep.subr.mxu0 0.0
        %1306 = vmatpush1.msra.mxu0 0.0
        %1307 = vmatprep.subr.mxu0 0.0
        %1308 = vmatpush1.msra.mxu0 0.0
        %1309 = vmatprep.subr.mxu0 0.0
        %1310 = vmatpush1.msra.mxu0 0.0
        %1311 = vmatprep.subr.mxu0 0.0
        %1312 = vmatpush1.msra.mxu0 0.0
        %1313 = vmatprep.subr.mxu0 0.0
        %1314 = vmatpush1.msra.mxu0 0.0
        %1315 = vmatprep.subr.mxu0 0.0
        %1316 = vmatpush1.msra.mxu0 0.0
        %1317 = vmatprep.subr.mxu0 0.0
        %1318 = vmatpush1.msra.mxu0 0.0
        %1319 = vmatprep.subr.mxu0 0.0
        %1320 = vmatpush1.msra.mxu0 0.0
        %1321 = vmatprep.subr.mxu0 0.0
        %1322 = vmatpush1.msra.mxu0 0.0
        %1323 = vmatprep.subr.mxu0 0.0
        %1324 = vmatpush1.msra.mxu0 0.0
        %1325 = vmatprep.subr.mxu0 0.0
        %1326 = vmatpush1.msra.mxu0 0.0
        %1327 = vmatprep.subr.mxu0 0.0
        %1328 = vmatpush1.msra.mxu0 0.0
        %1329 = vmatprep.subr.mxu0 0.0
        %1330 = vmatpush1.msra.mxu0 0.0
        %1331 = vmatprep.subr.mxu0 0.0
        %1332 = vmatpush1.msra.mxu0 0.0
        %1333 = vmatprep.subr.mxu0 0.0
        %1334 = vmatpush1.msra.mxu0 0.0
        %1335 = vmatprep.subr.mxu0 0.0
        %1336 = vmatpush1.msra.mxu0 0.0
        %1337 = vmatprep.subr.mxu0 0.0
        %1338 = vmatpush1.msra.mxu0 0.0
        %1339 = vmatprep.subr.mxu0 0.0
        %1340 = vmatpush1.msra.mxu0 0.0
        %1341 = vmatprep.subr.mxu0 0.0
        %1342 = vmatpush1.msra.mxu0 0.0
        %1343 = vmatprep.subr.mxu0 0.0
        %1344 = vmatpush1.msra.mxu0 0.0
        %1345 = vmatprep.subr.mxu0 0.0
        %1346 = vmatpush1.msra.mxu0 0.0
        %1347 = vmatprep.subr.mxu0 0.0
        %1348 = vmatpush1.msra.mxu0 0.0
        %1349 = vmatprep.subr.mxu0 0.0
        %1350 = vmatpush1.msra.mxu0 0.0
        %1351 = vmatprep.subr.mxu0 0.0
        %1352 = vmatpush1.msra.mxu0 0.0
        %1353 = vmatprep.subr.mxu0 0.0
        %1354 = vmatpush1.msra.mxu0 0.0
        %1355 = vmatprep.subr.mxu0 0.0
        %1356 = vmatpush1.msra.mxu0 0.0
        %1357 = vmatprep.mubr.f32.mxu0 0.0
        %1358 = vmatmul.mubr.f32.gmra.mrb[0].mxu0 %v1282
        %v1359 = vpop.f32.mrb[0].mxu0
        %v1360 = vadd.f32 %v1280, %v1359
        %v1361 = vpop.f32.mrb[0].mxu0
        %1362 = vmatprep.mubr.f32.mxu0 0.0
        %1363 = vmatmul.mubr.f32.gmra.mrb[0].mxu0 %v1285
        %v1364 = vpop.f32.mrb[0].mxu0
        %v1365 = vadd.f32 %v1280, %v1364
        %v1366 = vpop.f32.mrb[0].mxu0
        %1367 = vmatprep.mubr.f32.mxu0 0.0
        %1368 = vmatmul.mubr.f32.gmra.mrb[0].mxu0 %v1288
        %v1369 = vpop.f32.mrb[0].mxu0
        %v1370 = vadd.f32 %v1280, %v1369
        %v1371 = vpop.f32.mrb[0].mxu0
        %1372 = vmatprep.mubr.f32.mxu0 0.0
        %1373 = vmatmul.mubr.f32.gmra.mrb[0].mxu0 %v1291
        %v1374 = vpop.f32.mrb[0].mxu0
        %v1375 = vadd.f32 %v1280, %v1374
        %v1376 = vpop.f32.mrb[0].mxu0
        %1377 = vdwg.mxu0
        %v1378 = vmax.f32 %v1360, 0.0
        %v1379 = vmax.f32 %v1365, 0.0
        %v1380 = vmax.f32 %v1370, 0.0
        %v1381 = vmax.f32 %v1375, 0.0
        %v1382 = vld [vmem:[#allocation4 + $0x19d] sm:$0x1]
        %v1383 = vlaneseq
        %v1384 = vshrl.u32 %v1383, 7
        %v1385 = vsub.s32 0, %v1384
        %v1386 = vrot.slane %v1382, %v1385
        %v1387 = vmul.f32 %v1378, %v1386
        %v1388 = vmul.f32 %v1379, %v1386
        %v1389 = vmul.f32 %v1380, %v1386
        %v1390 = vmul.f32 %v1381, %v1386
        %v1391 = vsel %vm315, %v1387, 0.0
        %1392 = vadd.xlane.f32.xlu0 %v1391
        %v1393 = vpop.xlane.xlu0 %1392
        %v1394 = vsel %vm315, %v1388, 0.0
        %1395 = vadd.xlane.f32.xlu0 %v1394
        %v1396 = vpop.xlane.xlu0 %1395
        %v1397 = vsel %vm315, %v1389, 0.0
        %1398 = vadd.xlane.f32.xlu0 %v1397
        %v1399 = vpop.xlane.xlu0 %1398
        %v1400 = vsel %vm315, %v1390, 0.0
        %1401 = vadd.xlane.f32.xlu0 %v1400
        %v1402 = vpop.xlane.xlu0 %1401
        %v1403 = vld [vmem:[#allocation4 + $0x19e] sm:$0x1]
        %v1404 = vlaneseq
        %v1405 = vshrl.u32 %v1404, 7
        %v1406 = vsub.s32 0, %v1405
        %v1407 = vrot.slane %v1403, %v1406
        %v1408 = vadd.f32 %v1393, %v1407
        %v1409 = vadd.f32 %v1396, %v1407
        %v1410 = vadd.f32 %v1399, %v1407
        %v1411 = vadd.f32 %v1402, %v1407
        %vm1412 = vcmask 7168
        %v1413 = vsel %vm1412, %v1408, -inf
        %v1414 = vsel %vm1412, %v1409, -inf
        %v1415 = vsel %vm1412, %v1410, -inf
        %v1416 = vsel %vm1412, %v1411, -inf
        %v1417 = vmax.f32 %v1413, %v1414
        %v1418 = vmax.f32 %v1415, %v1416
        %v1419 = vmax.f32 %v1417, %v1418
        %1420 = vmax.xlane.f32.xlu0 %v1419
        %v1421 = vpop.xlane.xlu0 %1420
        %v1422 = vrot.slane %v1421, 4
        %v1423 = vmax.f32 %v1421, %v1422
        %v1424 = vrot.slane %v1423, 2
        %v1425 = vmax.f32 %v1423, %v1424
        %v1426 = vrot.slane %v1425, 1
        %v1427 = vmax.f32 %v1425, %v1426
        %s1428 = vtos %v1427
        %v1429 = vstv %s1428
        %v1430 = vsub.f32 %v1408, %v1429
        %v1431 = vsub.f32 %v1409, %v1429
        %v1432 = vsub.f32 %v1410, %v1429
        %v1433 = vsub.f32 %v1411, %v1429
        %v1434 = vmul.f32 %v1430, 1.442695
        %v1435 = vpow.pop %v1434
        %v1436 = vmul.f32 %v1431, 1.442695
        %v1437 = vpow.pop %v1436
        %v1438 = vmul.f32 %v1432, 1.442695
        %v1439 = vpow.pop %v1438
        %v1440 = vmul.f32 %v1433, 1.442695
        %v1441 = vpow.pop %v1440
        %v1442 = vld [vmem:[#allocation4 + $0x190] sm:$0xf]
        %1444 = vset.pattern.permute.xlu0 0
        %1445 = vperm.xlu0 %1444, %v1435
        %v1446 = vpop.permute.xlu0 %1445
        %1449 = vset.pattern.permute.xlu0 0
        %1450 = vperm.xlu0 %1449, %v1437
        %v1451 = vpop.permute.xlu0 %1450
        %1454 = vset.pattern.permute.xlu0 0
        %1455 = vperm.xlu0 %1454, %v1439
        %v1456 = vpop.permute.xlu0 %1455
        %1459 = vset.pattern.permute.xlu0 0
        %1460 = vperm.xlu0 %1459, %v1441
        %v1461 = vpop.permute.xlu0 %1460
        %v1463 = vmul.f32 %v1254, %v1446
        %v1464 = vmul.f32 %v1259, %v1451
        %v1465 = vmul.f32 %v1264, %v1456
        %v1466 = vmul.f32 %v1269, %v1461
        %v1468 = vsel %vm315, %v1442, 0
        %1470 = vmatprep.subr.mxu0 0.0
        %1471 = vmatpush1.msra.mxu0 %v1463
        %1472 = vmatprep.subr.mxu0 0.0
        %1473 = vmatpush1.msra.mxu0 %v1464
        %1474 = vmatprep.subr.mxu0 0.0
        %1475 = vmatpush1.msra.mxu0 %v1465
        %1476 = vmatprep.subr.mxu0 0.0
        %1477 = vmatpush1.msra.mxu0 %v1466
        %1478 = vmatprep.subr.mxu0 0.0
        %1479 = vmatpush1.msra.mxu0 0.0
        %1480 = vmatprep.subr.mxu0 0.0
        %1481 = vmatpush1.msra.mxu0 0.0
        %1482 = vmatprep.subr.mxu0 0.0
        %1483 = vmatpush1.msra.mxu0 0.0
        %1484 = vmatprep.subr.mxu0 0.0
        %1485 = vmatpush1.msra.mxu0 0.0
        %1486 = vmatprep.subr.mxu0 0.0
        %1487 = vmatpush1.msra.mxu0 0.0
        %1488 = vmatprep.subr.mxu0 0.0
        %1489 = vmatpush1.msra.mxu0 0.0
        %1490 = vmatprep.subr.mxu0 0.0
        %1491 = vmatpush1.msra.mxu0 0.0
        %1492 = vmatprep.subr.mxu0 0.0
        %1493 = vmatpush1.msra.mxu0 0.0
        %1494 = vmatprep.subr.mxu0 0.0
        %1495 = vmatpush1.msra.mxu0 0.0
        %1496 = vmatprep.subr.mxu0 0.0
        %1497 = vmatpush1.msra.mxu0 0.0
        %1498 = vmatprep.subr.mxu0 0.0
        %1499 = vmatpush1.msra.mxu0 0.0
        %1500 = vmatprep.subr.mxu0 0.0
        %1501 = vmatpush1.msra.mxu0 0.0
        %1502 = vmatprep.subr.mxu0 0.0
        %1503 = vmatpush1.msra.mxu0 0.0
        %1504 = vmatprep.subr.mxu0 0.0
        %1505 = vmatpush1.msra.mxu0 0.0
        %1506 = vmatprep.subr.mxu0 0.0
        %1507 = vmatpush1.msra.mxu0 0.0
        %1508 = vmatprep.subr.mxu0 0.0
        %1509 = vmatpush1.msra.mxu0 0.0
        %1510 = vmatprep.subr.mxu0 0.0
        %1511 = vmatpush1.msra.mxu0 0.0
        %1512 = vmatprep.subr.mxu0 0.0
        %1513 = vmatpush1.msra.mxu0 0.0
        %1514 = vmatprep.subr.mxu0 0.0
        %1515 = vmatpush1.msra.mxu0 0.0
        %1516 = vmatprep.subr.mxu0 0.0
        %1517 = vmatpush1.msra.mxu0 0.0
        %1518 = vmatprep.subr.mxu0 0.0
        %1519 = vmatpush1.msra.mxu0 0.0
        %1520 = vmatprep.subr.mxu0 0.0
        %1521 = vmatpush1.msra.mxu0 0.0
        %1522 = vmatprep.subr.mxu0 0.0
        %1523 = vmatpush1.msra.mxu0 0.0
        %1524 = vmatprep.subr.mxu0 0.0
        %1525 = vmatpush1.msra.mxu0 0.0
        %1526 = vmatprep.subr.mxu0 0.0
        %1527 = vmatpush1.msra.mxu0 0.0
        %1528 = vmatprep.subr.mxu0 0.0
        %1529 = vmatpush1.msra.mxu0 0.0
        %1530 = vmatprep.subr.mxu0 0.0
        %1531 = vmatpush1.msra.mxu0 0.0
        %1532 = vmatprep.subr.mxu0 0.0
        %1533 = vmatpush1.msra.mxu0 0.0
        %1534 = vmatprep.mubr.f32.mxu0 0.0
        %1535 = vmatmul.mubr.f32.gmra.mrb[0].mxu0 %v1468
        %v1536 = vpop.f32.mrb[0].mxu0
        %v1537 = vadd.f32 0.0, %v1536
        %v1538 = vpop.f32.mrb[0].mxu0
        %1539 = vdwg.mxu0
        %1540 = vmatprep.subr.mxu0 0.0
        %1541 = vmatpush1.msra.mxu0 %v1435
        %1542 = vmatprep.subr.mxu0 0.0
        %1543 = vmatpush1.msra.mxu0 %v1437
        %1544 = vmatprep.subr.mxu0 0.0
        %1545 = vmatpush1.msra.mxu0 %v1439
        %1546 = vmatprep.subr.mxu0 0.0
        %1547 = vmatpush1.msra.mxu0 %v1441
        %1548 = vmatprep.subr.mxu0 0.0
        %1549 = vmatpush1.msra.mxu0 0.0
        %1550 = vmatprep.subr.mxu0 0.0
        %1551 = vmatpush1.msra.mxu0 0.0
        %1552 = vmatprep.subr.mxu0 0.0
        %1553 = vmatpush1.msra.mxu0 0.0
        %1554 = vmatprep.subr.mxu0 0.0
        %1555 = vmatpush1.msra.mxu0 0.0
        %1556 = vmatprep.subr.mxu0 0.0
        %1557 = vmatpush1.msra.mxu0 0.0
        %1558 = vmatprep.subr.mxu0 0.0
        %1559 = vmatpush1.msra.mxu0 0.0
        %1560 = vmatprep.subr.mxu0 0.0
        %1561 = vmatpush1.msra.mxu0 0.0
        %1562 = vmatprep.subr.mxu0 0.0
        %1563 = vmatpush1.msra.mxu0 0.0
        %1564 = vmatprep.subr.mxu0 0.0
        %1565 = vmatpush1.msra.mxu0 0.0
        %1566 = vmatprep.subr.mxu0 0.0
        %1567 = vmatpush1.msra.mxu0 0.0
        %1568 = vmatprep.subr.mxu0 0.0
        %1569 = vmatpush1.msra.mxu0 0.0
        %1570 = vmatprep.subr.mxu0 0.0
        %1571 = vmatpush1.msra.mxu0 0.0
        %1572 = vmatprep.subr.mxu0 0.0
        %1573 = vmatpush1.msra.mxu0 0.0
        %1574 = vmatprep.subr.mxu0 0.0
        %1575 = vmatpush1.msra.mxu0 0.0
        %1576 = vmatprep.subr.mxu0 0.0
        %1577 = vmatpush1.msra.mxu0 0.0
        %1578 = vmatprep.subr.mxu0 0.0
        %1579 = vmatpush1.msra.mxu0 0.0
        %1580 = vmatprep.subr.mxu0 0.0
        %1581 = vmatpush1.msra.mxu0 0.0
        %1582 = vmatprep.subr.mxu0 0.0
        %1583 = vmatpush1.msra.mxu0 0.0
        %1584 = vmatprep.subr.mxu0 0.0
        %1585 = vmatpush1.msra.mxu0 0.0
        %1586 = vmatprep.subr.mxu0 0.0
        %1587 = vmatpush1.msra.mxu0 0.0
        %1588 = vmatprep.subr.mxu0 0.0
        %1589 = vmatpush1.msra.mxu0 0.0
        %1590 = vmatprep.subr.mxu0 0.0
        %1591 = vmatpush1.msra.mxu0 0.0
        %1592 = vmatprep.subr.mxu0 0.0
        %1593 = vmatpush1.msra.mxu0 0.0
        %1594 = vmatprep.subr.mxu0 0.0
        %1595 = vmatpush1.msra.mxu0 0.0
        %1596 = vmatprep.subr.mxu0 0.0
        %1597 = vmatpush1.msra.mxu0 0.0
        %1598 = vmatprep.subr.mxu0 0.0
        %1599 = vmatpush1.msra.mxu0 0.0
        %1600 = vmatprep.subr.mxu0 0.0
        %1601 = vmatpush1.msra.mxu0 0.0
        %1602 = vmatprep.subr.mxu0 0.0
        %1603 = vmatpush1.msra.mxu0 0.0
        %1604 = vmatprep.mubr.f32.mxu0 0.0
        %1605 = vmatmul.mubr.f32.gmra.mrb[0].mxu0 %v1468
        %v1606 = vpop.f32.mrb[0].mxu0
        %v1607 = vadd.f32 0.0, %v1606
        %v1608 = vpop.f32.mrb[0].mxu0
        %1609 = vdwg.mxu0
        %v1610 = vrcp.pop %v1607
        %1612 = vset.pattern.permute.xlu0 0
        %1613 = vperm.xlu0 %1612, %v1610
        %v1614 = vpop.permute.xlu0 %1613
        %v1616 = vmul.f32 %v1537, %v1614
        %v1617 = vld [vmem:[#allocation4 + $0x90] sm:$0xff]
        %v1618 = vld [vmem:[#allocation4 + $0x98] sm:$0xff]
        %v1619 = vld [vmem:[#allocation4 + $0xa0] sm:$0xff]
        %v1620 = vld [vmem:[#allocation4 + $0xa8] sm:$0xff]
        %v1621 = vld [vmem:[#allocation4 + $0x19f] sm:$0x1]
        %v1622 = vlaneseq
        %v1623 = vshrl.u32 %v1622, 7
        %v1624 = vsub.s32 0, %v1623
        %v1625 = vrot.slane %v1621, %v1624
        %v1627 = vsel %vm315, %v1616, 0
        %1629 = vmatprep.subr.mxu0 0.0
        %1630 = vmatpush1.msra.mxu0 %v1617
        %1631 = vmatprep.subr.mxu0 0.0
        %1632 = vmatpush1.msra.mxu0 %v1618
        %1633 = vmatprep.subr.mxu0 0.0
        %1634 = vmatpush1.msra.mxu0 %v1619
        %1635 = vmatprep.subr.mxu0 0.0
        %1636 = vmatpush1.msra.mxu0 %v1620
        %1637 = vmatprep.subr.mxu0 0.0
        %1638 = vmatpush1.msra.mxu0 0.0
        %1639 = vmatprep.subr.mxu0 0.0
        %1640 = vmatpush1.msra.mxu0 0.0
        %1641 = vmatprep.subr.mxu0 0.0
        %1642 = vmatpush1.msra.mxu0 0.0
        %1643 = vmatprep.subr.mxu0 0.0
        %1644 = vmatpush1.msra.mxu0 0.0
        %1645 = vmatprep.subr.mxu0 0.0
        %1646 = vmatpush1.msra.mxu0 0.0
        %1647 = vmatprep.subr.mxu0 0.0
        %1648 = vmatpush1.msra.mxu0 0.0
        %1649 = vmatprep.subr.mxu0 0.0
        %1650 = vmatpush1.msra.mxu0 0.0
        %1651 = vmatprep.subr.mxu0 0.0
        %1652 = vmatpush1.msra.mxu0 0.0
        %1653 = vmatprep.subr.mxu0 0.0
        %1654 = vmatpush1.msra.mxu0 0.0
        %1655 = vmatprep.subr.mxu0 0.0
        %1656 = vmatpush1.msra.mxu0 0.0
        %1657 = vmatprep.subr.mxu0 0.0
        %1658 = vmatpush1.msra.mxu0 0.0
        %1659 = vmatprep.subr.mxu0 0.0
        %1660 = vmatpush1.msra.mxu0 0.0
        %1661 = vmatprep.subr.mxu0 0.0
        %1662 = vmatpush1.msra.mxu0 0.0
        %1663 = vmatprep.subr.mxu0 0.0
        %1664 = vmatpush1.msra.mxu0 0.0
        %1665 = vmatprep.subr.mxu0 0.0
        %1666 = vmatpush1.msra.mxu0 0.0
        %1667 = vmatprep.subr.mxu0 0.0
        %1668 = vmatpush1.msra.mxu0 0.0
        %1669 = vmatprep.subr.mxu0 0.0
        %1670 = vmatpush1.msra.mxu0 0.0
        %1671 = vmatprep.subr.mxu0 0.0
        %1672 = vmatpush1.msra.mxu0 0.0
        %1673 = vmatprep.subr.mxu0 0.0
        %1674 = vmatpush1.msra.mxu0 0.0
        %1675 = vmatprep.subr.mxu0 0.0
        %1676 = vmatpush1.msra.mxu0 0.0
        %1677 = vmatprep.subr.mxu0 0.0
        %1678 = vmatpush1.msra.mxu0 0.0
        %1679 = vmatprep.subr.mxu0 0.0
        %1680 = vmatpush1.msra.mxu0 0.0
        %1681 = vmatprep.subr.mxu0 0.0
        %1682 = vmatpush1.msra.mxu0 0.0
        %1683 = vmatprep.subr.mxu0 0.0
        %1684 = vmatpush1.msra.mxu0 0.0
        %1685 = vmatprep.subr.mxu0 0.0
        %1686 = vmatpush1.msra.mxu0 0.0
        %1687 = vmatprep.subr.mxu0 0.0
        %1688 = vmatpush1.msra.mxu0 0.0
        %1689 = vmatprep.subr.mxu0 0.0
        %1690 = vmatpush1.msra.mxu0 0.0
        %1691 = vmatprep.subr.mxu0 0.0
        %1692 = vmatpush1.msra.mxu0 0.0
        %1693 = vmatprep.mubr.f32.mxu0 0.0
        %1694 = vmatmul.mubr.f32.gmra.mrb[0].mxu0 %v1627
        %v1695 = vpop.f32.mrb[0].mxu0
        %v1696 = vadd.f32 %v1625, %v1695
        %v1697 = vpop.f32.mrb[0].mxu0
        %1698 = vdwg.mxu0
        %v1699 = vmax.f32 %v1696, 0.0
        %v1700 = vld [vmem:[#allocation4 + $0xb0] sm:$0xff]
        %v1701 = vld [vmem:[#allocation4 + $0xb8] sm:$0xff]
        %v1702 = vld [vmem:[#allocation4 + $0xc0] sm:$0xff]
        %v1703 = vld [vmem:[#allocation4 + $0xc8] sm:$0xff]
        %v1704 = vld [vmem:[#allocation4 + $0x1a0] sm:$0x1]
        %v1705 = vlaneseq
        %v1706 = vshrl.u32 %v1705, 7
        %v1707 = vsub.s32 0, %v1706
        %v1708 = vrot.slane %v1704, %v1707
        %v1710 = vsel %vm315, %v1699, 0
        %1712 = vmatprep.subr.mxu0 0.0
        %1713 = vmatpush1.msra.mxu0 %v1700
        %1714 = vmatprep.subr.mxu0 0.0
        %1715 = vmatpush1.msra.mxu0 %v1701
        %1716 = vmatprep.subr.mxu0 0.0
        %1717 = vmatpush1.msra.mxu0 %v1702
        %1718 = vmatprep.subr.mxu0 0.0
        %1719 = vmatpush1.msra.mxu0 %v1703
        %1720 = vmatprep.subr.mxu0 0.0
        %1721 = vmatpush1.msra.mxu0 0.0
        %1722 = vmatprep.subr.mxu0 0.0
        %1723 = vmatpush1.msra.mxu0 0.0
        %1724 = vmatprep.subr.mxu0 0.0
        %1725 = vmatpush1.msra.mxu0 0.0
        %1726 = vmatprep.subr.mxu0 0.0
        %1727 = vmatpush1.msra.mxu0 0.0
        %1728 = vmatprep.subr.mxu0 0.0
        %1729 = vmatpush1.msra.mxu0 0.0
        %1730 = vmatprep.subr.mxu0 0.0
        %1731 = vmatpush1.msra.mxu0 0.0
        %1732 = vmatprep.subr.mxu0 0.0
        %1733 = vmatpush1.msra.mxu0 0.0
        %1734 = vmatprep.subr.mxu0 0.0
        %1735 = vmatpush1.msra.mxu0 0.0
        %1736 = vmatprep.subr.mxu0 0.0
        %1737 = vmatpush1.msra.mxu0 0.0
        %1738 = vmatprep.subr.mxu0 0.0
        %1739 = vmatpush1.msra.mxu0 0.0
        %1740 = vmatprep.subr.mxu0 0.0
        %1741 = vmatpush1.msra.mxu0 0.0
        %1742 = vmatprep.subr.mxu0 0.0
        %1743 = vmatpush1.msra.mxu0 0.0
        %1744 = vmatprep.subr.mxu0 0.0
        %1745 = vmatpush1.msra.mxu0 0.0
        %1746 = vmatprep.subr.mxu0 0.0
        %1747 = vmatpush1.msra.mxu0 0.0
        %1748 = vmatprep.subr.mxu0 0.0
        %1749 = vmatpush1.msra.mxu0 0.0
        %1750 = vmatprep.subr.mxu0 0.0
        %1751 = vmatpush1.msra.mxu0 0.0
        %1752 = vmatprep.subr.mxu0 0.0
        %1753 = vmatpush1.msra.mxu0 0.0
        %1754 = vmatprep.subr.mxu0 0.0
        %1755 = vmatpush1.msra.mxu0 0.0
        %1756 = vmatprep.subr.mxu0 0.0
        %1757 = vmatpush1.msra.mxu0 0.0
        %1758 = vmatprep.subr.mxu0 0.0
        %1759 = vmatpush1.msra.mxu0 0.0
        %1760 = vmatprep.subr.mxu0 0.0
        %1761 = vmatpush1.msra.mxu0 0.0
        %1762 = vmatprep.subr.mxu0 0.0
        %1763 = vmatpush1.msra.mxu0 0.0
        %1764 = vmatprep.subr.mxu0 0.0
        %1765 = vmatpush1.msra.mxu0 0.0
        %1766 = vmatprep.subr.mxu0 0.0
        %1767 = vmatpush1.msra.mxu0 0.0
        %1768 = vmatprep.subr.mxu0 0.0
        %1769 = vmatpush1.msra.mxu0 0.0
        %1770 = vmatprep.subr.mxu0 0.0
        %1771 = vmatpush1.msra.mxu0 0.0
        %1772 = vmatprep.subr.mxu0 0.0
        %1773 = vmatpush1.msra.mxu0 0.0
        %1774 = vmatprep.subr.mxu0 0.0
        %1775 = vmatpush1.msra.mxu0 0.0
        %1776 = vmatprep.mubr.f32.mxu0 0.0
        %1777 = vmatmul.mubr.f32.gmra.mrb[0].mxu0 %v1710
        %v1778 = vpop.f32.mrb[0].mxu0
        %v1779 = vadd.f32 %v1708, %v1778
        %v1780 = vpop.f32.mrb[0].mxu0
        %1781 = vdwg.mxu0
        %1782 = vst [vmem:[%s176] sm:$0xf] %v1779
        %p1783 = scmp.lt.s32.totalorder %s17, 7
        %s1784 = scalar_select %p1783, %s17, 7
        %s1785 = smul.addr %s1784, 4
        %s1786 = scalar_lea.vmem %s2, %s1785
        // Predicated region
        $region37: #{forward_batched.1} parent=27 // pred_check
          %p1787 = pneg %p82
        $region38: #{forward_batched.1} parent=27 // pred_check_branch
          %1789 = sbr.rel (%p1787) target = $region40
        $region39: #{forward_batched.1} parent=27 // pred_region
          _
        $region40: #{forward_batched.1} parent=27 // pred_fallthru
          _
      $region28: #{forward_batched.1} parent=5 // pred_fallthru
        _
      %p1790 = scmp.le.s32.totalorder 2, %s12
      // Predicated region
      $region41: #{forward_batched.1} parent=5 // pred_check
        %p1791 = pneg %p1790
      $region42: #{forward_batched.1} parent=5 // pred_check_branch
        %1793 = sbr.rel (%p1791) target = $region44
      $region43: #{forward_batched.1} parent=5 // pred_region
        %s1794 = ssub.s32 %s12, 2
        // Predicated region
        $region45: #{forward_batched.1} parent=43 // pred_check
          %p1795 = pneg %p88
        $region46: #{forward_batched.1} parent=43 // pred_check_branch
          %1797 = sbr.rel (%p1795) target = $region48
        $region47: #{forward_batched.1} parent=43 // pred_region
          %p1798 = scmp.lt.s32.totalorder %s18, 7
          %s1799 = scalar_select %p1798, %s18, 7
          %s1800 = smul.addr %s1799, 4
          %s1801 = scalar_lea.vmem %s2, %s1800
        $region48: #{forward_batched.1} parent=43 // pred_fallthru
          _
      $region44: #{forward_batched.1} parent=5 // pred_fallthru
        _
    $region6: #{forward_batched.1} parent=1 // loop_footer
      %s16 = sadd.s32 1, %s12
    $region7: #{forward_batched.1} parent=1 // loop_footer_branch
      %11 = sbr.rel target = $region3
    $region8: #{forward_batched.1} parent=1 // loop_exit
      _
    %1802 = vsyncpa [#allocation3], 1
    %s1803 = scalar_lea.sflag [#allocation3], 1
    %1804 = vsyncpa %s1803, 1
    %1805 = vsyncpa [#allocation5], 1

</llo_original>
